<compile_context>
chip_gen: v7x
topology: tpu7x:2x2x1
jax: 0.10.0
libtpu: 0.0.40
codegen_flags: <defaults>
</compile_context>

<pallas_src>
import functools

import jax
import jax.numpy as jnp
from jax import lax
from jax.experimental import pallas as pl
from jax.experimental.pallas import tpu as pltpu

KSIZE = 3
NEG_SLOPE = 0.01


def _cdiv(a, b):
    return -(-a // b)


def _make_kernel(TH, W, C2out, fold_out):
    """Kernel for one (batch, H-tile) grid step."""

    def kernel(x_ref, w_ref, b_ref, o_ref):
        # x_ref : (1, 1, TH+2, W+2, 2*Cin)  halo'd input window (mxu dtype)
        # w_ref : (3, 3, 2*Cin, 2*Cout)     fused complex weights (mxu dtype)
        # b_ref : (1, 2*Cout)               fused bias [br - bi | br + bi] (f32)
        # o_ref : (1, TH, W*2*Cout)  if fold_out else  (1, TH, W, 2*Cout)
        dn = (((2,), (0,)), ((), ()))  # contract channel dim of (TH,W,C) with (C,2Cout)

        # 3x3 taps, fully unrolled; accumulate in a loop-carried register value
        # (f32 via preferred_element_type) -- no scratch read-modify-write.
        acc = None
        for dh in range(KSIZE):
            for dw in range(KSIZE):
                xs = x_ref[0, 0, dh:dh + TH, dw:dw + W, :]        # (TH, W, 2*Cin)
                contrib = lax.dot_general(xs, w_ref[dh, dw], dn,
                                          preferred_element_type=jnp.float32)
                acc = contrib if acc is None else acc + contrib

        # Epilogue (f32): fused bias + LeakyReLU, single store.
        res = acc + b_ref[...]                                    # (TH,W,2Cout)+(1,2Cout)
        res = jnp.where(res > 0, res, NEG_SLOPE * res).astype(o_ref.dtype)
        if fold_out:
            # Lane-dense store: minor dim W*2Cout (>=128 for realistic W).
            o_ref[0] = res.reshape(TH, W * C2out)
        else:
            o_ref[0] = res

    return kernel


def _vmem_capacity_bytes():
    try:
        return int(pltpu.get_tpu_info().vmem_capacity_bytes)
    except Exception:
        return 64 * 1024 * 1024  # v7x per-TensorCore floor (safe lower bound)


def _auto_tile_h(N, H, W, c2in, c2out, in_itemsize):
    """Largest H-tile whose double-buffered blocks fit a VMEM budget, with enough
    grid steps for the DMA pipeline and for v7x's two TensorCores."""
    Wp = W + 2
    budget = int(0.45 * _vmem_capacity_bytes())      # headroom for weights / compiler scratch
    in_row = Wp * c2in * in_itemsize                  # one halo'd input row
    out_row = W * c2out * 4                           # one f32 output row
    # 2x double-buffered input + 2x double-buffered output + register-acc spill + epilogue temp
    per_row = 2 * in_row + 4 * out_row
    th = (budget - 4 * in_row) // max(per_row, 1)     # subtract halo rows of both input buffers
    th = min(th, 512)

    # Soft targets: >=2 H-tiles when N==1 (feed both v7x TensorCores), and >=4
    # grid steps overall for the double-buffer pipeline (when tiles stay >=8 rows).
    min_tiles = 2 if N == 1 else 1
    if N * _cdiv(H, 8) >= 4:
        min_tiles = max(min_tiles, _cdiv(4, N))
    th = min(th, _cdiv(H, min_tiles))
    th = max(8, 8 * _cdiv(th, 8))                     # multiple of 8 (out-block sublane rule)
    return th


@functools.partial(jax.jit, static_argnames=("tile_h", "mxu_dtype", "input_buffers"))
def complex_conv_layer(x, w_r, w_i, b_r, b_i, *, tile_h=None,
                       mxu_dtype=jnp.bfloat16, input_buffers=2):
    """x: (N, Cin, H, W, 2).  w_*: (Cout, Cin, 3, 3).  b_*: (Cout,)."""
    N, Cin, H, W, _ = x.shape
    Cout = w_r.shape[0]
    C2in, C2out = 2 * Cin, 2 * Cout
    Wp = W + 2
    out_dtype = x.dtype
    mxu_dtype = jnp.dtype(mxu_dtype)

    TH = (_auto_tile_h(N, H, W, C2in, C2out, mxu_dtype.itemsize)
          if tile_h is None else int(tile_h))
    n_h = _cdiv(H, TH)
    assert TH % 8 == 0 or n_h == 1, "tile_h must be a multiple of 8 (or cover all of H)"
    Hpad = n_h * TH
    fold_out = C2out < 128          # lane-dense folded output only when channels are narrow

    # ---- wrapper glue: one fused transpose + pad + overlapped-window gather pass ----
    # (N,Cin,H,W,2) -> (N,H,W,2,Cin) -> (N,H,W,2*Cin): channels = [real chans | imag chans]
    xc = jnp.transpose(x, (0, 2, 3, 4, 1)).reshape(N, H, W, C2in).astype(mxu_dtype)
    # zero pad: 1 halo row/col per side (conv padding=1) + H -> Hpad
    xc = jnp.pad(xc, ((0, 0), (1, 1 + Hpad - H), (1, 1), (0, 0)))   # (N, Hpad+2, Wp, C2in)
    # overlapped (TH+2)-row windows: each grid step's block carries its own halo,
    # so the kernel never assembles a slab in VMEM.
    rows = jnp.arange(n_h)[:, None] * TH + jnp.arange(TH + 2)[None, :]   # (n_h, TH+2)
    xg = xc[:, rows]                                                 # (N, n_h, TH+2, Wp, C2in)

    # fused complex weight (3,3,2Cin,2Cout): out chans [0:Cout]=real, [Cout:2Cout]=imag
    wr = jnp.transpose(w_r, (2, 3, 1, 0))   # OIHW -> HWIO (3,3,Cin,Cout)
    wi = jnp.transpose(w_i, (2, 3, 1, 0))
    w_top = jnp.concatenate([wr, wi], axis=3)      # real-input channels
    w_bot = jnp.concatenate([-wi, wr], axis=3)     # imag-input channels
    w_full = jnp.concatenate([w_top, w_bot], axis=2).astype(mxu_dtype)

    # fused bias, kept f32 for the epilogue: real half br - bi, imag half br + bi
    b_full = jnp.concatenate([b_r - b_i, b_r + b_i]).reshape(1, C2out).astype(jnp.float32)

    x_map = lambda n, h: (n, h, 0, 0, 0)
    if input_buffers == 2:
        x_spec = pl.BlockSpec((1, 1, TH + 2, Wp, C2in), x_map)
    else:  # deeper buffering if input DMA is exposed (review item: pl.Buffered)
        x_spec = pl.BlockSpec((1, 1, TH + 2, Wp, C2in), x_map,
                              pipeline_mode=pl.Buffered(input_buffers))
    in_specs = [
        x_spec,
        pl.BlockSpec((KSIZE, KSIZE, C2in, C2out), lambda n, h: (0, 0, 0, 0)),
        pl.BlockSpec((1, C2out), lambda n, h: (0, 0)),
    ]
    if fold_out:
        out_shape = jax.ShapeDtypeStruct((N, Hpad, W * C2out), out_dtype)
        out_spec = pl.BlockSpec((1, TH, W * C2out), lambda n, h: (n, h, 0))
    else:
        out_shape = jax.ShapeDtypeStruct((N, Hpad, W, C2out), out_dtype)
        out_spec = pl.BlockSpec((1, TH, W, C2out), lambda n, h: (n, h, 0, 0))

    vmem_cap = _vmem_capacity_bytes()
    vmem_limit = int(min(0.85 * vmem_cap, 100 * 1024 * 1024))

    y = pl.pallas_call(
        _make_kernel(TH, W, C2out, fold_out),
        out_shape=out_shape,
        grid_spec=pltpu.PrefetchScalarGridSpec(
            num_scalar_prefetch=0,
            grid=(N, n_h),
            in_specs=in_specs,
            out_specs=out_spec,
        ),
        compiler_params=pltpu.CompilerParams(
            dimension_semantics=("parallel", "parallel"),
            vmem_limit_bytes=vmem_limit,
        ),
    )(xg, w_full, b_full)

    if fold_out:
        y = y.reshape(N, Hpad, W, C2out)
    # back to PyTorch layout (N, Cout, H, W, 2); output channel halves are [real | imag]
    y = y[:, :H].reshape(N, H, W, 2, Cout)
    return jnp.transpose(y, (0, 4, 1, 2, 3))


def _reference(x, w_r, w_i, b_r, b_i):
    """Pure-JAX reference using lax.conv_general_dilated (NHWC/HWIO), f32."""
    xr = jnp.transpose(x[..., 0], (0, 2, 3, 1))
    xi = jnp.transpose(x[..., 1], (0, 2, 3, 1))
    wr = jnp.transpose(w_r, (2, 3, 1, 0))
    wi = jnp.transpose(w_i, (2, 3, 1, 0))
    dn = lax.conv_dimension_numbers(xr.shape, wr.shape, ("NHWC", "HWIO", "NHWC"))
    conv = lambda a, w: lax.conv_general_dilated(a, w, (1, 1), "SAME",
                                                 dimension_numbers=dn)
    yr = conv(xr, wr) + b_r - (conv(xi, wi) + b_i)
    yi = conv(xi, wr) + b_r + (conv(xr, wi) + b_i)
    lrelu = lambda v: jnp.where(v > 0, v, NEG_SLOPE * v)
    yr, yi = lrelu(yr), lrelu(yi)
    yr = jnp.transpose(yr, (0, 3, 1, 2))
    yi = jnp.transpose(yi, (0, 3, 1, 2))
    return jnp.stack([yr, yi], axis=-1)


if __name__ == "__main__":
    N, Cin, Cout, H, W = 2, 4, 8, 16, 16

    key = jax.random.PRNGKey(0)
    k_x, k_wr, k_wi, k_br, k_bi = jax.random.split(key, 5)

    x = jax.random.normal(k_x, (N, Cin, H, W, 2), dtype=jnp.float32)
    scale = 1.0 / jnp.sqrt(Cin * KSIZE * KSIZE)
    w_r = jax.random.normal(k_wr, (Cout, Cin, KSIZE, KSIZE), jnp.float32) * scale
    w_i = jax.random.normal(k_wi, (Cout, Cin, KSIZE, KSIZE), jnp.float32) * scale
    b_r = jax.random.normal(k_br, (Cout,), jnp.float32) * 0.1
    b_i = jax.random.normal(k_bi, (Cout,), jnp.float32) * 0.1

    ref = _reference(x, w_r, w_i, b_r, b_i)

    # Default path: bf16 MXU inputs, f32 accumulation + epilogue, auto-tiled
    # (grid = (2, 2) here -> exercises the overlapped-halo windows and megacore).
    out_bf16 = jax.block_until_ready(complex_conv_layer(x, w_r, w_i, b_r, b_i))
    assert out_bf16.shape == (N, Cout, H, W, 2)
    assert jnp.allclose(out_bf16, ref, atol=3e-2, rtol=3e-2), \
        float(jnp.max(jnp.abs(out_bf16 - ref)))

    # Exact-f32 MXU path with explicit tile_h (multi-tile halo path), tight tolerance.
    out_f32 = jax.block_until_ready(
        complex_conv_layer(x, w_r, w_i, b_r, b_i, tile_h=8, mxu_dtype=jnp.float32))
    assert jnp.allclose(out_f32, ref, atol=1e-4, rtol=1e-4), \
        float(jnp.max(jnp.abs(out_f32 - ref)))

    print("KERNEL_OK")
</pallas_src>

<mosaic_0001>
module attributes {stable_mosaic.version = 11 : i64} {
  func.func @kernel(%arg0: i32, %arg1: i32, %arg2: memref<1x1x10x18x8xbf16, #tpu.memory_space<vmem>>, %arg3: memref<3x3x8x16xbf16, #tpu.memory_space<vmem>>, %arg4: memref<1x16xf32, #tpu.memory_space<vmem>>, %arg5: memref<1x8x256xf32, #tpu.memory_space<vmem>>) attributes {dimension_semantics = [#tpu.dimension_semantics<parallel>, #tpu.dimension_semantics<parallel>], iteration_bounds = array<i64: 2, 2>, scalar_prefetch = 0 : i64, scratch_operands = 0 : i64, tpu.core_type = #tpu.core_type<tc>, window_params = [{transform_indices = @transform_0, window_bounds = array<i64: 1, 1, 10, 18, 8>}, {pipeline_mode = #tpu.pipeline_mode<synchronous>, transform_indices = @transform_1, window_bounds = array<i64: 3, 3, 8, 16>}, {pipeline_mode = #tpu.pipeline_mode<synchronous>, transform_indices = @transform_2, window_bounds = array<i64: 1, 16>}, {transform_indices = @transform_3, window_bounds = array<i64: 1, 8, 256>}]} {
    %c0 = arith.constant 0 : index
    %c0_0 = arith.constant 0 : index
    %c0_1 = arith.constant 0 : index
    %c0_2 = arith.constant 0 : index
    %c0_3 = arith.constant 0 : index
    %0 = vector.load %arg2[%c0, %c0_0, %c0_1, %c0_2, %c0_3] : memref<1x1x10x18x8xbf16, #tpu.memory_space<vmem>>, vector<1x1x8x16x8xbf16>
    %1 = vector.shape_cast %0 : vector<1x1x8x16x8xbf16> to vector<8x16x8xbf16>
    %c0_4 = arith.constant 0 : index
    %c0_5 = arith.constant 0 : index
    %c0_6 = arith.constant 0 : index
    %c0_7 = arith.constant 0 : index
    %2 = vector.load %arg3[%c0_4, %c0_5, %c0_6, %c0_7] : memref<3x3x8x16xbf16, #tpu.memory_space<vmem>>, vector<1x1x8x16xbf16>
    %3 = vector.shape_cast %2 : vector<1x1x8x16xbf16> to vector<8x16xbf16>
    %cst = arith.constant dense<0.000000e+00> : vector<8x16x16xf32>
    %4 = tpu.matmul %1, %3, %cst {dimension_numbers = #tpu.dot_dimension_numbers<[2], [0], [0, 1], [1], [0, 0, 0, 1, 1, 1], [], []>} : vector<8x16x8xbf16>, vector<8x16xbf16>, vector<8x16x16xf32> -> vector<8x16x16xf32>
    %c0_8 = arith.constant 0 : index
    %c0_9 = arith.constant 0 : index
    %c0_10 = arith.constant 0 : index
    %c1 = arith.constant 1 : index
    %c0_11 = arith.constant 0 : index
    %5 = vector.load %arg2[%c0_8, %c0_9, %c0_10, %c1, %c0_11] : memref<1x1x10x18x8xbf16, #tpu.memory_space<vmem>>, vector<1x1x8x16x8xbf16>
    %6 = vector.shape_cast %5 : vector<1x1x8x16x8xbf16> to vector<8x16x8xbf16>
    %c0_12 = arith.constant 0 : index
    %c1_13 = arith.constant 1 : index
    %c0_14 = arith.constant 0 : index
    %c0_15 = arith.constant 0 : index
    %7 = vector.load %arg3[%c0_12, %c1_13, %c0_14, %c0_15] : memref<3x3x8x16xbf16, #tpu.memory_space<vmem>>, vector<1x1x8x16xbf16>
    %8 = vector.shape_cast %7 : vector<1x1x8x16xbf16> to vector<8x16xbf16>
    %cst_16 = arith.constant dense<0.000000e+00> : vector<8x16x16xf32>
    %9 = tpu.matmul %6, %8, %cst_16 {dimension_numbers = #tpu.dot_dimension_numbers<[2], [0], [0, 1], [1], [0, 0, 0, 1, 1, 1], [], []>} : vector<8x16x8xbf16>, vector<8x16xbf16>, vector<8x16x16xf32> -> vector<8x16x16xf32>
    %10 = arith.addf %4, %9 : vector<8x16x16xf32>
    %c0_17 = arith.constant 0 : index
    %c0_18 = arith.constant 0 : index
    %c0_19 = arith.constant 0 : index
    %c2 = arith.constant 2 : index
    %c0_20 = arith.constant 0 : index
    %11 = vector.load %arg2[%c0_17, %c0_18, %c0_19, %c2, %c0_20] : memref<1x1x10x18x8xbf16, #tpu.memory_space<vmem>>, vector<1x1x8x16x8xbf16>
    %12 = vector.shape_cast %11 : vector<1x1x8x16x8xbf16> to vector<8x16x8xbf16>
    %c0_21 = arith.constant 0 : index
    %c2_22 = arith.constant 2 : index
    %c0_23 = arith.constant 0 : index
    %c0_24 = arith.constant 0 : index
    %13 = vector.load %arg3[%c0_21, %c2_22, %c0_23, %c0_24] : memref<3x3x8x16xbf16, #tpu.memory_space<vmem>>, vector<1x1x8x16xbf16>
    %14 = vector.shape_cast %13 : vector<1x1x8x16xbf16> to vector<8x16xbf16>
    %cst_25 = arith.constant dense<0.000000e+00> : vector<8x16x16xf32>
    %15 = tpu.matmul %12, %14, %cst_25 {dimension_numbers = #tpu.dot_dimension_numbers<[2], [0], [0, 1], [1], [0, 0, 0, 1, 1, 1], [], []>} : vector<8x16x8xbf16>, vector<8x16xbf16>, vector<8x16x16xf32> -> vector<8x16x16xf32>
    %16 = arith.addf %10, %15 : vector<8x16x16xf32>
    %c0_26 = arith.constant 0 : index
    %c0_27 = arith.constant 0 : index
    %c1_28 = arith.constant 1 : index
    %c0_29 = arith.constant 0 : index
    %c0_30 = arith.constant 0 : index
    %17 = vector.load %arg2[%c0_26, %c0_27, %c1_28, %c0_29, %c0_30] : memref<1x1x10x18x8xbf16, #tpu.memory_space<vmem>>, vector<1x1x8x16x8xbf16>
    %18 = vector.shape_cast %17 : vector<1x1x8x16x8xbf16> to vector<8x16x8xbf16>
    %c1_31 = arith.constant 1 : index
    %c0_32 = arith.constant 0 : index
    %c0_33 = arith.constant 0 : index
    %c0_34 = arith.constant 0 : index
    %19 = vector.load %arg3[%c1_31, %c0_32, %c0_33, %c0_34] : memref<3x3x8x16xbf16, #tpu.memory_space<vmem>>, vector<1x1x8x16xbf16>
    %20 = vector.shape_cast %19 : vector<1x1x8x16xbf16> to vector<8x16xbf16>
    %cst_35 = arith.constant dense<0.000000e+00> : vector<8x16x16xf32>
    %21 = tpu.matmul %18, %20, %cst_35 {dimension_numbers = #tpu.dot_dimension_numbers<[2], [0], [0, 1], [1], [0, 0, 0, 1, 1, 1], [], []>} : vector<8x16x8xbf16>, vector<8x16xbf16>, vector<8x16x16xf32> -> vector<8x16x16xf32>
    %22 = arith.addf %16, %21 : vector<8x16x16xf32>
    %c0_36 = arith.constant 0 : index
    %c0_37 = arith.constant 0 : index
    %c1_38 = arith.constant 1 : index
    %c1_39 = arith.constant 1 : index
    %c0_40 = arith.constant 0 : index
    %23 = vector.load %arg2[%c0_36, %c0_37, %c1_38, %c1_39, %c0_40] : memref<1x1x10x18x8xbf16, #tpu.memory_space<vmem>>, vector<1x1x8x16x8xbf16>
    %24 = vector.shape_cast %23 : vector<1x1x8x16x8xbf16> to vector<8x16x8xbf16>
    %c1_41 = arith.constant 1 : index
    %c1_42 = arith.constant 1 : index
    %c0_43 = arith.constant 0 : index
    %c0_44 = arith.constant 0 : index
    %25 = vector.load %arg3[%c1_41, %c1_42, %c0_43, %c0_44] : memref<3x3x8x16xbf16, #tpu.memory_space<vmem>>, vector<1x1x8x16xbf16>
    %26 = vector.shape_cast %25 : vector<1x1x8x16xbf16> to vector<8x16xbf16>
    %cst_45 = arith.constant dense<0.000000e+00> : vector<8x16x16xf32>
    %27 = tpu.matmul %24, %26, %cst_45 {dimension_numbers = #tpu.dot_dimension_numbers<[2], [0], [0, 1], [1], [0, 0, 0, 1, 1, 1], [], []>} : vector<8x16x8xbf16>, vector<8x16xbf16>, vector<8x16x16xf32> -> vector<8x16x16xf32>
    %28 = arith.addf %22, %27 : vector<8x16x16xf32>
    %c0_46 = arith.constant 0 : index
    %c0_47 = arith.constant 0 : index
    %c1_48 = arith.constant 1 : index
    %c2_49 = arith.constant 2 : index
    %c0_50 = arith.constant 0 : index
    %29 = vector.load %arg2[%c0_46, %c0_47, %c1_48, %c2_49, %c0_50] : memref<1x1x10x18x8xbf16, #tpu.memory_space<vmem>>, vector<1x1x8x16x8xbf16>
    %30 = vector.shape_cast %29 : vector<1x1x8x16x8xbf16> to vector<8x16x8xbf16>
    %c1_51 = arith.constant 1 : index
    %c2_52 = arith.constant 2 : index
    %c0_53 = arith.constant 0 : index
    %c0_54 = arith.constant 0 : index
    %31 = vector.load %arg3[%c1_51, %c2_52, %c0_53, %c0_54] : memref<3x3x8x16xbf16, #tpu.memory_space<vmem>>, vector<1x1x8x16xbf16>
    %32 = vector.shape_cast %31 : vector<1x1x8x16xbf16> to vector<8x16xbf16>
    %cst_55 = arith.constant dense<0.000000e+00> : vector<8x16x16xf32>
    %33 = tpu.matmul %30, %32, %cst_55 {dimension_numbers = #tpu.dot_dimension_numbers<[2], [0], [0, 1], [1], [0, 0, 0, 1, 1, 1], [], []>} : vector<8x16x8xbf16>, vector<8x16xbf16>, vector<8x16x16xf32> -> vector<8x16x16xf32>
    %34 = arith.addf %28, %33 : vector<8x16x16xf32>
    %c0_56 = arith.constant 0 : index
    %c0_57 = arith.constant 0 : index
    %c2_58 = arith.constant 2 : index
    %c0_59 = arith.constant 0 : index
    %c0_60 = arith.constant 0 : index
    %35 = vector.load %arg2[%c0_56, %c0_57, %c2_58, %c0_59, %c0_60] : memref<1x1x10x18x8xbf16, #tpu.memory_space<vmem>>, vector<1x1x8x16x8xbf16>
    %36 = vector.shape_cast %35 : vector<1x1x8x16x8xbf16> to vector<8x16x8xbf16>
    %c2_61 = arith.constant 2 : index
    %c0_62 = arith.constant 0 : index
    %c0_63 = arith.constant 0 : index
    %c0_64 = arith.constant 0 : index
    %37 = vector.load %arg3[%c2_61, %c0_62, %c0_63, %c0_64] : memref<3x3x8x16xbf16, #tpu.memory_space<vmem>>, vector<1x1x8x16xbf16>
    %38 = vector.shape_cast %37 : vector<1x1x8x16xbf16> to vector<8x16xbf16>
    %cst_65 = arith.constant dense<0.000000e+00> : vector<8x16x16xf32>
    %39 = tpu.matmul %36, %38, %cst_65 {dimension_numbers = #tpu.dot_dimension_numbers<[2], [0], [0, 1], [1], [0, 0, 0, 1, 1, 1], [], []>} : vector<8x16x8xbf16>, vector<8x16xbf16>, vector<8x16x16xf32> -> vector<8x16x16xf32>
    %40 = arith.addf %34, %39 : vector<8x16x16xf32>
    %c0_66 = arith.constant 0 : index
    %c0_67 = arith.constant 0 : index
    %c2_68 = arith.constant 2 : index
    %c1_69 = arith.constant 1 : index
    %c0_70 = arith.constant 0 : index
    %41 = vector.load %arg2[%c0_66, %c0_67, %c2_68, %c1_69, %c0_70] : memref<1x1x10x18x8xbf16, #tpu.memory_space<vmem>>, vector<1x1x8x16x8xbf16>
    %42 = vector.shape_cast %41 : vector<1x1x8x16x8xbf16> to vector<8x16x8xbf16>
    %c2_71 = arith.constant 2 : index
    %c1_72 = arith.constant 1 : index
    %c0_73 = arith.constant 0 : index
    %c0_74 = arith.constant 0 : index
    %43 = vector.load %arg3[%c2_71, %c1_72, %c0_73, %c0_74] : memref<3x3x8x16xbf16, #tpu.memory_space<vmem>>, vector<1x1x8x16xbf16>
    %44 = vector.shape_cast %43 : vector<1x1x8x16xbf16> to vector<8x16xbf16>
    %cst_75 = arith.constant dense<0.000000e+00> : vector<8x16x16xf32>
    %45 = tpu.matmul %42, %44, %cst_75 {dimension_numbers = #tpu.dot_dimension_numbers<[2], [0], [0, 1], [1], [0, 0, 0, 1, 1, 1], [], []>} : vector<8x16x8xbf16>, vector<8x16xbf16>, vector<8x16x16xf32> -> vector<8x16x16xf32>
    %46 = arith.addf %40, %45 : vector<8x16x16xf32>
    %c0_76 = arith.constant 0 : index
    %c0_77 = arith.constant 0 : index
    %c2_78 = arith.constant 2 : index
    %c2_79 = arith.constant 2 : index
    %c0_80 = arith.constant 0 : index
    %47 = vector.load %arg2[%c0_76, %c0_77, %c2_78, %c2_79, %c0_80] : memref<1x1x10x18x8xbf16, #tpu.memory_space<vmem>>, vector<1x1x8x16x8xbf16>
    %48 = vector.shape_cast %47 : vector<1x1x8x16x8xbf16> to vector<8x16x8xbf16>
    %c2_81 = arith.constant 2 : index
    %c2_82 = arith.constant 2 : index
    %c0_83 = arith.constant 0 : index
    %c0_84 = arith.constant 0 : index
    %49 = vector.load %arg3[%c2_81, %c2_82, %c0_83, %c0_84] : memref<3x3x8x16xbf16, #tpu.memory_space<vmem>>, vector<1x1x8x16xbf16>
    %50 = vector.shape_cast %49 : vector<1x1x8x16xbf16> to vector<8x16xbf16>
    %cst_85 = arith.constant dense<0.000000e+00> : vector<8x16x16xf32>
    %51 = tpu.matmul %48, %50, %cst_85 {dimension_numbers = #tpu.dot_dimension_numbers<[2], [0], [0, 1], [1], [0, 0, 0, 1, 1, 1], [], []>} : vector<8x16x8xbf16>, vector<8x16xbf16>, vector<8x16x16xf32> -> vector<8x16x16xf32>
    %52 = arith.addf %46, %51 : vector<8x16x16xf32>
    %c0_86 = arith.constant 0 : index
    %c0_87 = arith.constant 0 : index
    %53 = vector.load %arg4[%c0_86, %c0_87] : memref<1x16xf32, #tpu.memory_space<vmem>>, vector<1x16xf32>
    %54 = vector.shape_cast %53 : vector<1x16xf32> to vector<1x1x16xf32>
    %55 = vector.broadcast %54 : vector<1x1x16xf32> to vector<8x16x16xf32>
    %56 = arith.addf %52, %55 : vector<8x16x16xf32>
    %cst_88 = arith.constant 0.000000e+00 : f32
    %57 = vector.broadcast %cst_88 : f32 to vector<8x16x16xf32>
    %58 = arith.cmpf ogt, %56, %57 : vector<8x16x16xf32>
    %cst_89 = arith.constant 0.00999999977 : f32
    %59 = vector.broadcast %cst_89 : f32 to vector<8x16x16xf32>
    %60 = arith.mulf %59, %56 : vector<8x16x16xf32>
    %61 = arith.select %58, %56, %60 : vector<8x16x16xi1>, vector<8x16x16xf32>
    %62 = vector.shape_cast %61 : vector<8x16x16xf32> to vector<8x256xf32>
    %c0_90 = arith.constant 0 : index
    %c0_91 = arith.constant 0 : index
    %c0_92 = arith.constant 0 : index
    %63 = vector.load %arg5[%c0_90, %c0_91, %c0_92] : memref<1x8x256xf32, #tpu.memory_space<vmem>>, vector<1x8x256xf32>
    %64 = vector.shape_cast %63 : vector<1x8x256xf32> to vector<8x256xf32>
    %65 = vector.shape_cast %62 : vector<8x256xf32> to vector<1x8x256xf32>
    tpu.vector_store %arg5[%c0_90, %c0_91, %c0_92], %65 {strides = array<i32>} : memref<1x8x256xf32, #tpu.memory_space<vmem>>, vector<1x8x256xf32>,
    return
  }
  func.func @transform_0(%arg0: i32, %arg1: i32) -> (i32, i32, i32, i32, i32) {
    %c0_i32 = arith.constant 0 : i32
    %c0_i32_0 = arith.constant 0 : i32
    %c0_i32_1 = arith.constant 0 : i32
    %c0_i32_2 = arith.constant 0 : i32
    return %arg0, %arg1, %c0_i32, %c0_i32_0, %c0_i32_1 : i32, i32, i32, i32, i32
  }
  func.func @transform_1(%arg0: i32, %arg1: i32) -> (i32, i32, i32, i32) {
    %c0_i32 = arith.constant 0 : i32
    %c0_i32_0 = arith.constant 0 : i32
    %c0_i32_1 = arith.constant 0 : i32
    %c0_i32_2 = arith.constant 0 : i32
    %c0_i32_3 = arith.constant 0 : i32
    return %c0_i32, %c0_i32_0, %c0_i32_1, %c0_i32_2 : i32, i32, i32, i32
  }
  func.func @transform_2(%arg0: i32, %arg1: i32) -> (i32, i32) {
    %c0_i32 = arith.constant 0 : i32
    %c0_i32_0 = arith.constant 0 : i32
    %c0_i32_1 = arith.constant 0 : i32
    return %c0_i32, %c0_i32_0 : i32, i32
  }
  func.func @transform_3(%arg0: i32, %arg1: i32) -> (i32, i32, i32) {
    %c0_i32 = arith.constant 0 : i32
    %c0_i32_0 = arith.constant 0 : i32
    return %arg0, %arg1, %c0_i32 : i32, i32, i32
  }
}

</mosaic_0001>

<llo_original>
// kernel: complex_conv_layer.1
$region0: #{complex_conv_layer.1}
  #allocation0 [shape = 'u32[]', space=smem, size = 0x4, offset = 0x4, fixed_abs, tag = 'smem constant byte address 0x4 - core index']
  #allocation1 [shape = 'u32[144,128]{1,0:T(1,128)}', space=vmem, size = 0x12000, scoped, tag = 'internal scratch']
  %s0 = inlined_call_operand.vmem [shape: bf16[2,2,10,18,8], index: 0, kind: input, shape index: {}]
  %s1 = inlined_call_operand.vmem [shape: bf16[3,3,8,16], index: 1, kind: input, shape index: {}]
  %s2 = inlined_call_operand.vmem [shape: f32[1,16], index: 2, kind: input, shape index: {}]
  %s3 = inlined_call_operand.vmem [shape: f32[2,16,256], index: 3, kind: output, shape index: {}]
  %s4 = sld [smem:[#allocation0]]
  $region45: #{complex_conv_layer.1} parent=0
    _
  %s6 = ssub.s32 1, %s4
  %s7 = scalar_select 0, %s6, %s4
  loop: start=0, step=1, limit=6
  $region2: #{complex_conv_layer.1} parent=0 // loop_pre_header
    _
  $region3: #{complex_conv_layer.1} parent=0 // loop_header
    %s9 = sphi 0, %s13
    %p10 = scmp.ge.s32.totalorder %s9, 6
    %s16 = sphi 0, %s28
    %s17 = sphi 0, %s24
    %s18 = sphi 0, %s16
    %s19 = sphi 0, %s17
    %s20 = sphi 0, %s18
    %s21 = sphi 0, %s19
    %s33 = sphi 0, %s35
    %s36 = sphi 0, %s33
    %s37 = sphi 0, %s36
    %s53 = sphi 0, %s37
    %s57 = sphi 0, %s57
    %s59 = sphi 0, %s57
    %s60 = sphi 0, %s59
    %s74 = sphi 0, %s60
    %s78 = sphi 0, %s78
    %s80 = sphi 0, %s78
    %s81 = sphi 0, %s80
    %s95 = sphi 0, %s81
    %s103 = sphi 0, %s105
    %s106 = sphi 0, %s103
    %s107 = sphi 0, %s106
    %s123 = sphi 0, %s107
  $region4: #{complex_conv_layer.1} parent=0 // loop_header_branch
    %12 = sbr.rel (%p10) target = $region8
  $region5: #{complex_conv_layer.1} parent=0 // loop_body
    %s14 = ssub.s32 %s9, 1
    %s15 = ssub.s32 %s9, 2
    %s22 = sadd.s32 1, %s17
    %p23 = scmp.ge.s32.totalorder %s22, 2
    %s24 = scalar_select %p23, 0, %s22
    %s25 = sadd.s32 1, %s16
    %s26 = scalar_select %p23, %s25, %s16
    %p27 = scmp.ge.s32.totalorder %s26, 2
    %s28 = scalar_select %p27, 0, %s26
    %s29 = ssub.s32 %s16, %s28
    %s30 = ssub.s32 %s17, %s24
    %s31 = sor.u32 %s29, %s30
    %p32 = scmp.eq.s32.totalorder %s31, 0
    %s34 = sadd.s32 %s33, 1
    %s35 = scalar_select %p32, %s33, %s34
    %p38 = pneg %p32
    %p39 = scmp.eq.s32.totalorder %s9, 3
    %p40 = por %p38, %p39
    %p41 = scmp.ne.s32.totalorder %s33, %s36
    %p42 = scmp.eq.s32.totalorder %s9, 0
    %p43 = por %p41, %p42
    %p44 = scmp.ne.s32.totalorder %s33, %s36
    %p45 = scmp.eq.s32.totalorder %s14, 3
    %p46 = por %p44, %p45
    %p47 = scmp.ne.s32.totalorder %s36, %s37
    %p48 = scmp.eq.s32.totalorder %s14, 0
    %p49 = por %p47, %p48
    %p50 = scmp.ne.s32.totalorder %s36, %s37
    %p51 = scmp.eq.s32.totalorder %s15, 3
    %p52 = por %p50, %p51
    %p54 = scmp.ne.s32.totalorder %s37, %s53
    %p55 = scmp.eq.s32.totalorder %s15, 0
    %p56 = por %p54, %p55
    %s58 = sadd.s32 %s57, 1
    %p61 = scmp.eq.s32.totalorder %s9, 3
    %p62 = scmp.ne.s32.totalorder %s57, %s59
    %p63 = scmp.eq.s32.totalorder %s9, 0
    %p64 = por %p62, %p63
    %p65 = scmp.ne.s32.totalorder %s57, %s59
    %p66 = scmp.eq.s32.totalorder %s14, 3
    %p67 = por %p65, %p66
    %p68 = scmp.ne.s32.totalorder %s59, %s60
    %p69 = scmp.eq.s32.totalorder %s14, 0
    %p70 = por %p68, %p69
    %p71 = scmp.ne.s32.totalorder %s59, %s60
    %p72 = scmp.eq.s32.totalorder %s15, 3
    %p73 = por %p71, %p72
    %p75 = scmp.ne.s32.totalorder %s60, %s74
    %p76 = scmp.eq.s32.totalorder %s15, 0
    %p77 = por %p75, %p76
    %s79 = sadd.s32 %s78, 1
    %p82 = scmp.eq.s32.totalorder %s9, 3
    %p83 = scmp.ne.s32.totalorder %s78, %s80
    %p84 = scmp.eq.s32.totalorder %s9, 0
    %p85 = por %p83, %p84
    %p86 = scmp.ne.s32.totalorder %s78, %s80
    %p87 = scmp.eq.s32.totalorder %s14, 3
    %p88 = por %p86, %p87
    %p89 = scmp.ne.s32.totalorder %s80, %s81
    %p90 = scmp.eq.s32.totalorder %s14, 0
    %p91 = por %p89, %p90
    %p92 = scmp.ne.s32.totalorder %s80, %s81
    %p93 = scmp.eq.s32.totalorder %s15, 3
    %p94 = por %p92, %p93
    %p96 = scmp.ne.s32.totalorder %s81, %s95
    %p97 = scmp.eq.s32.totalorder %s15, 0
    %p98 = por %p96, %p97
    %s99 = ssub.s32 %s16, %s28
    %s100 = ssub.s32 %s17, %s24
    %s101 = sor.u32 %s99, %s100
    %p102 = scmp.eq.s32.totalorder %s101, 0
    %s104 = sadd.s32 %s103, 1
    %s105 = scalar_select %p102, %s103, %s104
    %p108 = pneg %p102
    %p109 = scmp.eq.s32.totalorder %s9, 3
    %p110 = por %p108, %p109
    %p111 = scmp.ne.s32.totalorder %s103, %s106
    %p112 = scmp.eq.s32.totalorder %s9, 0
    %p113 = por %p111, %p112
    %p114 = scmp.ne.s32.totalorder %s103, %s106
    %p115 = scmp.eq.s32.totalorder %s14, 3
    %p116 = por %p114, %p115
    %p117 = scmp.ne.s32.totalorder %s106, %s107
    %p118 = scmp.eq.s32.totalorder %s14, 0
    %p119 = por %p117, %p118
    %p120 = scmp.ne.s32.totalorder %s106, %s107
    %p121 = scmp.eq.s32.totalorder %s15, 3
    %p122 = por %p120, %p121
    %p124 = scmp.ne.s32.totalorder %s107, %s123
    %p125 = scmp.eq.s32.totalorder %s15, 0
    %p126 = por %p124, %p125
    %p127 = scmp.le.s32.totalorder 1, %s9
    %p128 = scmp.lt.s32.totalorder %s9, 5
    %p129 = pnand %p127, %p128
    %p130 = pneg %p129
    // Predicated region
    $region9: #{complex_conv_layer.1} parent=5 // pred_check
      _
    $region10: #{complex_conv_layer.1} parent=5 // pred_check_branch
      %132 = sbr.rel (%p129) target = $region12
    $region11: #{complex_conv_layer.1} parent=5 // pred_region
      %s133 = ssub.s32 %s9, 1
      // Predicated region
      $region13: #{complex_conv_layer.1} parent=11 // pred_check
        %p134 = pneg %p70
      $region14: #{complex_conv_layer.1} parent=11 // pred_check_branch
        %136 = sbr.rel (%p134) target = $region16
      $region15: #{complex_conv_layer.1} parent=11 // pred_region
        _
      $region16: #{complex_conv_layer.1} parent=11 // pred_fallthru
        _
      // Predicated region
      $region17: #{complex_conv_layer.1} parent=11 // pred_check
        %p137 = pneg %p91
      $region18: #{complex_conv_layer.1} parent=11 // pred_check_branch
        %139 = sbr.rel (%p137) target = $region20
      $region19: #{complex_conv_layer.1} parent=11 // pred_region
        _
      $region20: #{complex_conv_layer.1} parent=11 // pred_fallthru
        _
    $region12: #{complex_conv_layer.1} parent=5 // pred_fallthru
      _
    %p140 = scmp.lt.s32.totalorder %s9, 4
    // Predicated region
    $region21: #{complex_conv_layer.1} parent=5 // pred_check
      %p141 = pneg %p140
    $region22: #{complex_conv_layer.1} parent=5 // pred_check_branch
      %143 = sbr.rel (%p141) target = $region24
    $region23: #{complex_conv_layer.1} parent=5 // pred_region
      // Predicated region
      $region25: #{complex_conv_layer.1} parent=23 // pred_check
        %p144 = pneg %p43
      $region26: #{complex_conv_layer.1} parent=23 // pred_check_branch
        %146 = sbr.rel (%p144) target = $region28
      $region27: #{complex_conv_layer.1} parent=23 // pred_region
        %p147 = scmp.lt.s32.totalorder %s16, 1
        %s148 = scalar_select %p147, %s16, 1
        %p149 = scmp.lt.s32.totalorder %s17, 1
        %s150 = scalar_select %p149, %s17, 1
        %s151 = smul.addr %s150, 30
        %s152 = smul.addr %s148, 60
        %s153 = sadd.s32 %s151, %s152
        %s154 = smul.addr %s153, 4
        %s155 = scalar_lea.vmem %s0, %s154
      $region28: #{complex_conv_layer.1} parent=23 // pred_fallthru
        _
    $region24: #{complex_conv_layer.1} parent=5 // pred_fallthru
      _
    %p156 = scmp.le.s32.totalorder 1, %s9
    %p157 = scmp.lt.s32.totalorder %s9, 5
    %p158 = pnand %p156, %p157
    %p159 = pneg %p158
    // Predicated region
    $region29: #{complex_conv_layer.1} parent=5 // pred_check
      _
    $region30: #{complex_conv_layer.1} parent=5 // pred_check_branch
      %161 = sbr.rel (%p158) target = $region32
    $region31: #{complex_conv_layer.1} parent=5 // pred_region
      %s162 = ssub.s32 %s9, 1
      %p163 = scmp.lt.s32.totalorder %s18, 1
      %s164 = scalar_select %p163, %s18, 1
      %p165 = scmp.lt.s32.totalorder %s19, 1
      %s166 = scalar_select %p165, %s19, 1
      %s167 = smul.addr %s166, 30
      %s168 = smul.addr %s164, 60
      %s169 = sadd.s32 %s167, %s168
      %s170 = smul.addr %s169, 4
      %s171 = scalar_lea.vmem %s0, %s170
      %p172 = pneg %p49
      %p173 = pneg %p46
      %p174 = pneg %p70
      %p175 = pneg %p67
      %p176 = pneg %p91
      %p177 = pneg %p88
      %p178 = pneg %p119
      %p179 = pneg %p116
      %p180 = scmp.lt.s32.totalorder %s18, 1
      %s181 = scalar_select %p180, %s18, 1
      %p182 = scmp.lt.s32.totalorder %s19, 1
      %s183 = scalar_select %p182, %s19, 1
      %s184 = smul.addr %s183, 2
      %s185 = smul.addr %s181, 4
      %s186 = sadd.s32 %s184, %s185
      %s187 = smul.addr %s186, 8
      %s188 = scalar_lea.vmem %s3, %s187
      %p189 = scmp.lt.s32.totalorder %s18, 1
      %s190 = scalar_select %p189, %s18, 1
      %p191 = scmp.lt.s32.totalorder %s19, 1
      %s192 = scalar_select %p191, %s19, 1
      %s193 = smul.addr %s192, 30
      %s194 = smul.addr %s190, 60
      %s195 = sadd.s32 %s193, %s194
      %s196 = smul.addr %s195, 4
      %s197 = scalar_lea.vmem %s0, %s196
      %p198 = scmp.lt.s32.totalorder %s18, 1
      %s199 = scalar_select %p198, %s18, 1
      %p200 = scmp.lt.s32.totalorder %s19, 1
      %s201 = scalar_select %p200, %s19, 1
      %s202 = smul.addr %s201, 2
      %s203 = smul.addr %s199, 4
      %s204 = sadd.s32 %s202, %s203
      %s205 = smul.addr %s204, 8
      %s206 = scalar_lea.vmem %s3, %s205
      %v208 = vld [vmem:[%s197] sm:$0xf]
      %v209 = vld [vmem:[%s197 + $0x4] sm:$0xf]
      %v210 = vld [vmem:[%s197 + $0xc] sm:$0xf]
      %v211 = vld [vmem:[%s197 + $0x10] sm:$0xf]
      %v212 = vld [vmem:[%s197 + $0x18] sm:$0xf]
      %v213 = vld [vmem:[%s197 + $0x1c] sm:$0xf]
      %v214 = vld [vmem:[%s197 + $0x24] sm:$0xf]
      %v215 = vld [vmem:[%s197 + $0x28] sm:$0xf]
      %v216 = vld [vmem:[%s197 + $0x30] sm:$0xf]
      %v217 = vld [vmem:[%s197 + $0x34] sm:$0xf]
      %v218 = vld [vmem:[%s197 + $0x3c] sm:$0xf]
      %v219 = vld [vmem:[%s197 + $0x40] sm:$0xf]
      %v220 = vld [vmem:[%s197 + $0x48] sm:$0xf]
      %v221 = vld [vmem:[%s197 + $0x4c] sm:$0xf]
      %v222 = vld [vmem:[%s197 + $0x54] sm:$0xf]
      %v223 = vld [vmem:[%s197 + $0x58] sm:$0xf]
      %v224 = vld [vmem:[%s1] sm:$0xf]
      %v225 = vld [vmem:[%s197 + $0x8] sm:$0x1]
      %v226 = vld [vmem:[%s197 + $0x14] sm:$0x1]
      %v227 = vld [vmem:[%s197 + $0x20] sm:$0x1]
      %v228 = vld [vmem:[%s197 + $0x2c] sm:$0x1]
      %v229 = vld [vmem:[%s197 + $0x38] sm:$0x1]
      %v230 = vld [vmem:[%s197 + $0x44] sm:$0x1]
      %v231 = vld [vmem:[%s197 + $0x50] sm:$0x1]
      %v232 = vld [vmem:[%s197 + $0x5c] sm:$0x1]
      %s233 = scalar_lea.vmem %s1, 4
      %v234 = vld [vmem:[%s233] sm:$0xf]
      %vm235 = vsmask.f32 3328
      %vm236 = vsmask.f32 7440
      %vm237 = vmor %vm235, %vm236
      %v239 = vshrl.u32 %v208, 16
      %v241 = vrot.slane %v239, 4
      %v242 = vshll.u32 %v208, 16
      %v244 = vrot.slane %v242, 5
      %v245 = vor.u32 %v241, %v244
      %v246 = vrot.slane %v245, 4
      %v248 = vshll.u32 %v209, 16
      %v250 = vrot.slane %v248, 5
      %v251 = vsel %vm237, %v246, %v250
      %v252 = vshrl.u32 %v209, 16
      %v254 = vrot.slane %v252, 4
      %v255 = vor.u32 %v254, %v250
      %v256 = vrot.slane %v255, 4
      %v258 = vshll.u32 %v225, 16
      %v260 = vrot.slane %v258, 5
      %v261 = vsel %vm237, %v256, %v260
      %v263 = vshrl.u32 %v210, 16
      %v265 = vrot.slane %v263, 4
      %v266 = vshll.u32 %v210, 16
      %v268 = vrot.slane %v266, 5
      %v269 = vor.u32 %v265, %v268
      %v270 = vrot.slane %v269, 4
      %v272 = vshll.u32 %v211, 16
      %v274 = vrot.slane %v272, 5
      %v275 = vsel %vm237, %v270, %v274
      %v276 = vshrl.u32 %v211, 16
      %v278 = vrot.slane %v276, 4
      %v279 = vor.u32 %v278, %v274
      %v280 = vrot.slane %v279, 4
      %v282 = vshll.u32 %v226, 16
      %v284 = vrot.slane %v282, 5
      %v285 = vsel %vm237, %v280, %v284
      %v287 = vshrl.u32 %v212, 16
      %v289 = vrot.slane %v287, 4
      %v290 = vshll.u32 %v212, 16
      %v292 = vrot.slane %v290, 5
      %v293 = vor.u32 %v289, %v292
      %v294 = vrot.slane %v293, 4
      %v296 = vshll.u32 %v213, 16
      %v298 = vrot.slane %v296, 5
      %v299 = vsel %vm237, %v294, %v298
      %v300 = vshrl.u32 %v213, 16
      %v302 = vrot.slane %v300, 4
      %v303 = vor.u32 %v302, %v298
      %v304 = vrot.slane %v303, 4
      %v306 = vshll.u32 %v227, 16
      %v308 = vrot.slane %v306, 5
      %v309 = vsel %vm237, %v304, %v308
      %v311 = vshrl.u32 %v214, 16
      %v313 = vrot.slane %v311, 4
      %v314 = vshll.u32 %v214, 16
      %v316 = vrot.slane %v314, 5
      %v317 = vor.u32 %v313, %v316
      %v318 = vrot.slane %v317, 4
      %v320 = vshll.u32 %v215, 16
      %v322 = vrot.slane %v320, 5
      %v323 = vsel %vm237, %v318, %v322
      %v324 = vshrl.u32 %v215, 16
      %v326 = vrot.slane %v324, 4
      %v327 = vor.u32 %v326, %v322
      %v328 = vrot.slane %v327, 4
      %v330 = vshll.u32 %v228, 16
      %v332 = vrot.slane %v330, 5
      %v333 = vsel %vm237, %v328, %v332
      %v335 = vshrl.u32 %v216, 16
      %v337 = vrot.slane %v335, 4
      %v338 = vshll.u32 %v216, 16
      %v340 = vrot.slane %v338, 5
      %v341 = vor.u32 %v337, %v340
      %v342 = vrot.slane %v341, 4
      %v344 = vshll.u32 %v217, 16
      %v346 = vrot.slane %v344, 5
      %v347 = vsel %vm237, %v342, %v346
      %v348 = vshrl.u32 %v217, 16
      %v350 = vrot.slane %v348, 4
      %v351 = vor.u32 %v350, %v346
      %v352 = vrot.slane %v351, 4
      %v354 = vshll.u32 %v229, 16
      %v356 = vrot.slane %v354, 5
      %v357 = vsel %vm237, %v352, %v356
      %v359 = vshrl.u32 %v218, 16
      %v361 = vrot.slane %v359, 4
      %v362 = vshll.u32 %v218, 16
      %v364 = vrot.slane %v362, 5
      %v365 = vor.u32 %v361, %v364
      %v366 = vrot.slane %v365, 4
      %v368 = vshll.u32 %v219, 16
      %v370 = vrot.slane %v368, 5
      %v371 = vsel %vm237, %v366, %v370
      %v372 = vshrl.u32 %v219, 16
      %v374 = vrot.slane %v372, 4
      %v375 = vor.u32 %v374, %v370
      %v376 = vrot.slane %v375, 4
      %v378 = vshll.u32 %v230, 16
      %v380 = vrot.slane %v378, 5
      %v381 = vsel %vm237, %v376, %v380
      %v383 = vshrl.u32 %v220, 16
      %v385 = vrot.slane %v383, 4
      %v386 = vshll.u32 %v220, 16
      %v388 = vrot.slane %v386, 5
      %v389 = vor.u32 %v385, %v388
      %v390 = vrot.slane %v389, 4
      %v392 = vshll.u32 %v221, 16
      %v394 = vrot.slane %v392, 5
      %v395 = vsel %vm237, %v390, %v394
      %v396 = vshrl.u32 %v221, 16
      %v398 = vrot.slane %v396, 4
      %v399 = vor.u32 %v398, %v394
      %v400 = vrot.slane %v399, 4
      %v402 = vshll.u32 %v231, 16
      %v404 = vrot.slane %v402, 5
      %v405 = vsel %vm237, %v400, %v404
      %v407 = vshrl.u32 %v222, 16
      %v409 = vrot.slane %v407, 4
      %v410 = vshll.u32 %v222, 16
      %v412 = vrot.slane %v410, 5
      %v413 = vor.u32 %v409, %v412
      %v414 = vrot.slane %v413, 4
      %v416 = vshll.u32 %v223, 16
      %v418 = vrot.slane %v416, 5
      %v419 = vsel %vm237, %v414, %v418
      %v420 = vshrl.u32 %v223, 16
      %v422 = vrot.slane %v420, 4
      %v423 = vor.u32 %v422, %v418
      %v424 = vrot.slane %v423, 4
      %v426 = vshll.u32 %v232, 16
      %v428 = vrot.slane %v426, 5
      %v429 = vsel %vm237, %v424, %v428
      %v430 = vunpack.c.l.b16 %v251
      %v431 = vunpack.c.l.b16 %v261
      %v432 = vunpack.c.l.b16 %v275
      %v433 = vunpack.c.l.b16 %v285
      %v434 = vunpack.c.l.b16 %v299
      %v435 = vunpack.c.l.b16 %v309
      %v436 = vunpack.c.l.b16 %v323
      %v437 = vunpack.c.l.b16 %v333
      %v438 = vunpack.c.l.b16 %v347
      %v439 = vunpack.c.l.b16 %v357
      %v440 = vunpack.c.l.b16 %v371
      %v441 = vunpack.c.l.b16 %v381
      %v442 = vunpack.c.l.b16 %v395
      %v443 = vunpack.c.l.b16 %v405
      %v444 = vunpack.c.l.b16 %v419
      %v445 = vunpack.c.l.b16 %v429
      %v446 = vpack.c.b16 %v431, %v430
      %v447 = vpack.c.b16 %v433, %v432
      %v448 = vpack.c.b16 %v435, %v434
      %v449 = vpack.c.b16 %v437, %v436
      %v450 = vpack.c.b16 %v439, %v438
      %v451 = vpack.c.b16 %v441, %v440
      %v452 = vpack.c.b16 %v443, %v442
      %v453 = vpack.c.b16 %v445, %v444
      %vm454 = vcmask 64512
      %v456 = vsel %vm454, %v446, 0
      %v459 = vsel %vm454, %v447, 0
      %v462 = vsel %vm454, %v448, 0
      %v465 = vsel %vm454, %v449, 0
      %v468 = vsel %vm454, %v450, 0
      %v471 = vsel %vm454, %v451, 0
      %v474 = vsel %vm454, %v452, 0
      %v477 = vsel %vm454, %v453, 0
      %vm479 = vcmask 1043456
      %v481 = vsel %vm479, %v234, 0
      %483 = vmatprep.subr.bf16.mxu0 0
      %484 = vmatpush1.bf16.msra.mxu0 %v481
      %485 = vmatprep.subr.bf16.mxu0 0
      %486 = vmatpush1.bf16.msra.mxu0 0
      %487 = vmatprep.subr.bf16.mxu0 0
      %488 = vmatpush1.bf16.msra.mxu0 0
      %489 = vmatprep.subr.bf16.mxu0 0
      %490 = vmatpush1.bf16.msra.mxu0 0
      %491 = vmatprep.subr.bf16.mxu0 0
      %492 = vmatpush1.bf16.msra.mxu0 0
      %493 = vmatprep.subr.bf16.mxu0 0
      %494 = vmatpush1.bf16.msra.mxu0 0
      %495 = vmatprep.subr.bf16.mxu0 0
      %496 = vmatpush1.bf16.msra.mxu0 0
      %497 = vmatprep.subr.bf16.mxu0 0
      %498 = vmatpush1.bf16.msra.mxu0 0
      %499 = vmatprep.subr.bf16.mxu0 0
      %500 = vmatpush1.bf16.msra.mxu0 0
      %501 = vmatprep.subr.bf16.mxu0 0
      %502 = vmatpush1.bf16.msra.mxu0 0
      %503 = vmatprep.subr.bf16.mxu0 0
      %504 = vmatpush1.bf16.msra.mxu0 0
      %505 = vmatprep.subr.bf16.mxu0 0
      %506 = vmatpush1.bf16.msra.mxu0 0
      %507 = vmatprep.subr.bf16.mxu0 0
      %508 = vmatpush1.bf16.msra.mxu0 0
      %509 = vmatprep.subr.bf16.mxu0 0
      %510 = vmatpush1.bf16.msra.mxu0 0
      %511 = vmatprep.subr.bf16.mxu0 0
      %512 = vmatpush1.bf16.msra.mxu0 0
      %513 = vmatprep.subr.bf16.mxu0 0
      %514 = vmatpush1.bf16.msra.mxu0 0
      %515 = vmatprep.mubr.bf16.mxu0 0
      %516 = vmatmul.mubr.bf16.gmra.mrb[0].mxu0 %v456
      %v517 = vpop.f32.mrb[0].mxu0
      %v518 = vadd.f32 0.0, %v517
      %v519 = vpop.f32.mrb[0].mxu0
      %v520 = vpop.f32.mrb[0].mxu0
      %v521 = vadd.f32 0.0, %v520
      %v522 = vpop.f32.mrb[0].mxu0
      %523 = vmatprep.mubr.bf16.mxu0 0
      %524 = vmatmul.mubr.bf16.gmra.mrb[0].mxu0 %v459
      %v525 = vpop.f32.mrb[0].mxu0
      %v526 = vadd.f32 0.0, %v525
      %v527 = vpop.f32.mrb[0].mxu0
      %v528 = vpop.f32.mrb[0].mxu0
      %v529 = vadd.f32 0.0, %v528
      %v530 = vpop.f32.mrb[0].mxu0
      %531 = vmatprep.mubr.bf16.mxu0 0
      %532 = vmatmul.mubr.bf16.gmra.mrb[0].mxu0 %v462
      %v533 = vpop.f32.mrb[0].mxu0
      %v534 = vadd.f32 0.0, %v533
      %v535 = vpop.f32.mrb[0].mxu0
      %v536 = vpop.f32.mrb[0].mxu0
      %v537 = vadd.f32 0.0, %v536
      %v538 = vpop.f32.mrb[0].mxu0
      %539 = vmatprep.mubr.bf16.mxu0 0
      %540 = vmatmul.mubr.bf16.gmra.mrb[0].mxu0 %v465
      %v541 = vpop.f32.mrb[0].mxu0
      %v542 = vadd.f32 0.0, %v541
      %v543 = vpop.f32.mrb[0].mxu0
      %v544 = vpop.f32.mrb[0].mxu0
      %v545 = vadd.f32 0.0, %v544
      %v546 = vpop.f32.mrb[0].mxu0
      %547 = vmatprep.mubr.bf16.mxu0 0
      %548 = vmatmul.mubr.bf16.gmra.mrb[0].mxu0 %v468
      %v549 = vpop.f32.mrb[0].mxu0
      %v550 = vadd.f32 0.0, %v549
      %v551 = vpop.f32.mrb[0].mxu0
      %v552 = vpop.f32.mrb[0].mxu0
      %v553 = vadd.f32 0.0, %v552
      %v554 = vpop.f32.mrb[0].mxu0
      %555 = vmatprep.mubr.bf16.mxu0 0
      %556 = vmatmul.mubr.bf16.gmra.mrb[0].mxu0 %v471
      %v557 = vpop.f32.mrb[0].mxu0
      %v558 = vadd.f32 0.0, %v557
      %v559 = vpop.f32.mrb[0].mxu0
      %v560 = vpop.f32.mrb[0].mxu0
      %v561 = vadd.f32 0.0, %v560
      %v562 = vpop.f32.mrb[0].mxu0
      %563 = vmatprep.mubr.bf16.mxu0 0
      %564 = vmatmul.mubr.bf16.gmra.mrb[0].mxu0 %v474
      %v565 = vpop.f32.mrb[0].mxu0
      %v566 = vadd.f32 0.0, %v565
      %v567 = vpop.f32.mrb[0].mxu0
      %v568 = vpop.f32.mrb[0].mxu0
      %v569 = vadd.f32 0.0, %v568
      %v570 = vpop.f32.mrb[0].mxu0
      %571 = vmatprep.mubr.bf16.mxu0 0
      %572 = vmatmul.mubr.bf16.gmra.mrb[0].mxu0 %v477
      %v573 = vpop.f32.mrb[0].mxu0
      %v574 = vadd.f32 0.0, %v573
      %v575 = vpop.f32.mrb[0].mxu0
      %v576 = vpop.f32.mrb[0].mxu0
      %v577 = vadd.f32 0.0, %v576
      %v578 = vpop.f32.mrb[0].mxu0
      %579 = vdwg.mxu0
      %v596 = vunpack.c.l.b16 %v208
      %v597 = vunpack.c.l.b16 %v209
      %v598 = vunpack.c.l.b16 %v210
      %v599 = vunpack.c.l.b16 %v211
      %v600 = vunpack.c.l.b16 %v212
      %v601 = vunpack.c.l.b16 %v213
      %v602 = vunpack.c.l.b16 %v214
      %v603 = vunpack.c.l.b16 %v215
      %v604 = vunpack.c.l.b16 %v216
      %v605 = vunpack.c.l.b16 %v217
      %v606 = vunpack.c.l.b16 %v218
      %v607 = vunpack.c.l.b16 %v219
      %v608 = vunpack.c.l.b16 %v220
      %v609 = vunpack.c.l.b16 %v221
      %v610 = vunpack.c.l.b16 %v222
      %v611 = vunpack.c.l.b16 %v223
      %v612 = vpack.c.b16 %v597, %v596
      %v613 = vpack.c.b16 %v599, %v598
      %v614 = vpack.c.b16 %v601, %v600
      %v615 = vpack.c.b16 %v603, %v602
      %v616 = vpack.c.b16 %v605, %v604
      %v617 = vpack.c.b16 %v607, %v606
      %v618 = vpack.c.b16 %v609, %v608
      %v619 = vpack.c.b16 %v611, %v610
      %v621 = vsel %vm454, %v612, 0
      %v624 = vsel %vm454, %v613, 0
      %v627 = vsel %vm454, %v614, 0
      %v630 = vsel %vm454, %v615, 0
      %v633 = vsel %vm454, %v616, 0
      %v636 = vsel %vm454, %v617, 0
      %v639 = vsel %vm454, %v618, 0
      %v642 = vsel %vm454, %v619, 0
      %v645 = vsel %vm479, %v224, 0
      %647 = vmatprep.subr.bf16.mxu0 0
      %648 = vmatpush1.bf16.msra.mxu0 %v645
      %649 = vmatprep.subr.bf16.mxu0 0
      %650 = vmatpush1.bf16.msra.mxu0 0
      %651 = vmatprep.subr.bf16.mxu0 0
      %652 = vmatpush1.bf16.msra.mxu0 0
      %653 = vmatprep.subr.bf16.mxu0 0
      %654 = vmatpush1.bf16.msra.mxu0 0
      %655 = vmatprep.subr.bf16.mxu0 0
      %656 = vmatpush1.bf16.msra.mxu0 0
      %657 = vmatprep.subr.bf16.mxu0 0
      %658 = vmatpush1.bf16.msra.mxu0 0
      %659 = vmatprep.subr.bf16.mxu0 0
      %660 = vmatpush1.bf16.msra.mxu0 0
      %661 = vmatprep.subr.bf16.mxu0 0
      %662 = vmatpush1.bf16.msra.mxu0 0
      %663 = vmatprep.subr.bf16.mxu0 0
      %664 = vmatpush1.bf16.msra.mxu0 0
      %665 = vmatprep.subr.bf16.mxu0 0
      %666 = vmatpush1.bf16.msra.mxu0 0
      %667 = vmatprep.subr.bf16.mxu0 0
      %668 = vmatpush1.bf16.msra.mxu0 0
      %669 = vmatprep.subr.bf16.mxu0 0
      %670 = vmatpush1.bf16.msra.mxu0 0
      %671 = vmatprep.subr.bf16.mxu0 0
      %672 = vmatpush1.bf16.msra.mxu0 0
      %673 = vmatprep.subr.bf16.mxu0 0
      %674 = vmatpush1.bf16.msra.mxu0 0
      %675 = vmatprep.subr.bf16.mxu0 0
      %676 = vmatpush1.bf16.msra.mxu0 0
      %677 = vmatprep.subr.bf16.mxu0 0
      %678 = vmatpush1.bf16.msra.mxu0 0
      %679 = vmatprep.mubr.bf16.mxu0 0
      %680 = vmatmul.mubr.bf16.gmra.mrb[0].mxu0 %v621
      %v681 = vpop.f32.mrb[0].mxu0
      %v682 = vadd.f32 %v518, %v681
      %v683 = vpop.f32.mrb[0].mxu0
      %v684 = vpop.f32.mrb[0].mxu0
      %v685 = vadd.f32 %v521, %v684
      %v686 = vpop.f32.mrb[0].mxu0
      %687 = vmatprep.mubr.bf16.mxu0 0
      %688 = vmatmul.mubr.bf16.gmra.mrb[0].mxu0 %v624
      %v689 = vpop.f32.mrb[0].mxu0
      %v690 = vadd.f32 %v526, %v689
      %v691 = vpop.f32.mrb[0].mxu0
      %v692 = vpop.f32.mrb[0].mxu0
      %v693 = vadd.f32 %v529, %v692
      %v694 = vpop.f32.mrb[0].mxu0
      %695 = vmatprep.mubr.bf16.mxu0 0
      %696 = vmatmul.mubr.bf16.gmra.mrb[0].mxu0 %v627
      %v697 = vpop.f32.mrb[0].mxu0
      %v698 = vadd.f32 %v534, %v697
      %v699 = vpop.f32.mrb[0].mxu0
      %v700 = vpop.f32.mrb[0].mxu0
      %v701 = vadd.f32 %v537, %v700
      %v702 = vpop.f32.mrb[0].mxu0
      %703 = vmatprep.mubr.bf16.mxu0 0
      %704 = vmatmul.mubr.bf16.gmra.mrb[0].mxu0 %v630
      %v705 = vpop.f32.mrb[0].mxu0
      %v706 = vadd.f32 %v542, %v705
      %v707 = vpop.f32.mrb[0].mxu0
      %v708 = vpop.f32.mrb[0].mxu0
      %v709 = vadd.f32 %v545, %v708
      %v710 = vpop.f32.mrb[0].mxu0
      %711 = vmatprep.mubr.bf16.mxu0 0
      %712 = vmatmul.mubr.bf16.gmra.mrb[0].mxu0 %v633
      %v713 = vpop.f32.mrb[0].mxu0
      %v714 = vadd.f32 %v550, %v713
      %v715 = vpop.f32.mrb[0].mxu0
      %v716 = vpop.f32.mrb[0].mxu0
      %v717 = vadd.f32 %v553, %v716
      %v718 = vpop.f32.mrb[0].mxu0
      %719 = vmatprep.mubr.bf16.mxu0 0
      %720 = vmatmul.mubr.bf16.gmra.mrb[0].mxu0 %v636
      %v721 = vpop.f32.mrb[0].mxu0
      %v722 = vadd.f32 %v558, %v721
      %v723 = vpop.f32.mrb[0].mxu0
      %v724 = vpop.f32.mrb[0].mxu0
      %v725 = vadd.f32 %v561, %v724
      %v726 = vpop.f32.mrb[0].mxu0
      %727 = vmatprep.mubr.bf16.mxu0 0
      %728 = vmatmul.mubr.bf16.gmra.mrb[0].mxu0 %v639
      %v729 = vpop.f32.mrb[0].mxu0
      %v730 = vadd.f32 %v566, %v729
      %v731 = vpop.f32.mrb[0].mxu0
      %v732 = vpop.f32.mrb[0].mxu0
      %v733 = vadd.f32 %v569, %v732
      %v734 = vpop.f32.mrb[0].mxu0
      %735 = vmatprep.mubr.bf16.mxu0 0
      %736 = vmatmul.mubr.bf16.gmra.mrb[0].mxu0 %v642
      %v737 = vpop.f32.mrb[0].mxu0
      %v738 = vadd.f32 %v574, %v737
      %v739 = vpop.f32.mrb[0].mxu0
      %v740 = vpop.f32.mrb[0].mxu0
      %v741 = vadd.f32 %v577, %v740
      %v742 = vpop.f32.mrb[0].mxu0
      %743 = vdwg.mxu0
      %v744 = vld [vmem:[%s197] sm:$0xe]
      %v745 = vld [vmem:[%s197 + $0xc] sm:$0xe]
      %v746 = vld [vmem:[%s197 + $0x18] sm:$0xe]
      %v747 = vld [vmem:[%s197 + $0x24] sm:$0xe]
      %v748 = vld [vmem:[%s197 + $0x30] sm:$0xe]
      %v749 = vld [vmem:[%s197 + $0x3c] sm:$0xe]
      %v750 = vld [vmem:[%s197 + $0x48] sm:$0xe]
      %v751 = vld [vmem:[%s197 + $0x54] sm:$0xe]
      %s752 = scalar_lea.vmem %s1, 8
      %v753 = vld [vmem:[%s752] sm:$0xf]
      %vm770 = vcmask 1042432
      %vm771 = vcmask 1046532
      %vm772 = vmor %vm770, %vm771
      %v773 = vrot.slane %v744, 5
      %v774 = vrot.slane %v773, 4
      %v775 = vrot.slane %v209, 5
      %v776 = vsel %vm772, %v774, %v775
      %v777 = vrot.slane %v775, 4
      %v778 = vrot.slane %v225, 5
      %v779 = vsel %vm772, %v777, %v778
      %v780 = vrot.slane %v745, 5
      %v781 = vrot.slane %v780, 4
      %v782 = vrot.slane %v211, 5
      %v783 = vsel %vm772, %v781, %v782
      %v784 = vrot.slane %v782, 4
      %v785 = vrot.slane %v226, 5
      %v786 = vsel %vm772, %v784, %v785
      %v787 = vrot.slane %v746, 5
      %v788 = vrot.slane %v787, 4
      %v789 = vrot.slane %v213, 5
      %v790 = vsel %vm772, %v788, %v789
      %v791 = vrot.slane %v789, 4
      %v792 = vrot.slane %v227, 5
      %v793 = vsel %vm772, %v791, %v792
      %v794 = vrot.slane %v747, 5
      %v795 = vrot.slane %v794, 4
      %v796 = vrot.slane %v215, 5
      %v797 = vsel %vm772, %v795, %v796
      %v798 = vrot.slane %v796, 4
      %v799 = vrot.slane %v228, 5
      %v800 = vsel %vm772, %v798, %v799
      %v801 = vrot.slane %v748, 5
      %v802 = vrot.slane %v801, 4
      %v803 = vrot.slane %v217, 5
      %v804 = vsel %vm772, %v802, %v803
      %v805 = vrot.slane %v803, 4
      %v806 = vrot.slane %v229, 5
      %v807 = vsel %vm772, %v805, %v806
      %v808 = vrot.slane %v749, 5
      %v809 = vrot.slane %v808, 4
      %v810 = vrot.slane %v219, 5
      %v811 = vsel %vm772, %v809, %v810
      %v812 = vrot.slane %v810, 4
      %v813 = vrot.slane %v230, 5
      %v814 = vsel %vm772, %v812, %v813
      %v815 = vrot.slane %v750, 5
      %v816 = vrot.slane %v815, 4
      %v817 = vrot.slane %v221, 5
      %v818 = vsel %vm772, %v816, %v817
      %v819 = vrot.slane %v817, 4
      %v820 = vrot.slane %v231, 5
      %v821 = vsel %vm772, %v819, %v820
      %v822 = vrot.slane %v751, 5
      %v823 = vrot.slane %v822, 4
      %v824 = vrot.slane %v223, 5
      %v825 = vsel %vm772, %v823, %v824
      %v826 = vrot.slane %v824, 4
      %v827 = vrot.slane %v232, 5
      %v828 = vsel %vm772, %v826, %v827
      %v829 = vunpack.c.l.b16 %v776
      %v830 = vunpack.c.l.b16 %v779
      %v831 = vunpack.c.l.b16 %v783
      %v832 = vunpack.c.l.b16 %v786
      %v833 = vunpack.c.l.b16 %v790
      %v834 = vunpack.c.l.b16 %v793
      %v835 = vunpack.c.l.b16 %v797
      %v836 = vunpack.c.l.b16 %v800
      %v837 = vunpack.c.l.b16 %v804
      %v838 = vunpack.c.l.b16 %v807
      %v839 = vunpack.c.l.b16 %v811
      %v840 = vunpack.c.l.b16 %v814
      %v841 = vunpack.c.l.b16 %v818
      %v842 = vunpack.c.l.b16 %v821
      %v843 = vunpack.c.l.b16 %v825
      %v844 = vunpack.c.l.b16 %v828
      %v845 = vpack.c.b16 %v830, %v829
      %v846 = vpack.c.b16 %v832, %v831
      %v847 = vpack.c.b16 %v834, %v833
      %v848 = vpack.c.b16 %v836, %v835
      %v849 = vpack.c.b16 %v838, %v837
      %v850 = vpack.c.b16 %v840, %v839
      %v851 = vpack.c.b16 %v842, %v841
      %v852 = vpack.c.b16 %v844, %v843
      %v854 = vsel %vm454, %v845, 0
      %v857 = vsel %vm454, %v846, 0
      %v860 = vsel %vm454, %v847, 0
      %v863 = vsel %vm454, %v848, 0
      %v866 = vsel %vm454, %v849, 0
      %v869 = vsel %vm454, %v850, 0
      %v872 = vsel %vm454, %v851, 0
      %v875 = vsel %vm454, %v852, 0
      %v878 = vsel %vm479, %v753, 0
      %880 = vmatprep.subr.bf16.mxu0 0
      %881 = vmatpush1.bf16.msra.mxu0 %v878
      %882 = vmatprep.subr.bf16.mxu0 0
      %883 = vmatpush1.bf16.msra.mxu0 0
      %884 = vmatprep.subr.bf16.mxu0 0
      %885 = vmatpush1.bf16.msra.mxu0 0
      %886 = vmatprep.subr.bf16.mxu0 0
      %887 = vmatpush1.bf16.msra.mxu0 0
      %888 = vmatprep.subr.bf16.mxu0 0
      %889 = vmatpush1.bf16.msra.mxu0 0
      %890 = vmatprep.subr.bf16.mxu0 0
      %891 = vmatpush1.bf16.msra.mxu0 0
      %892 = vmatprep.subr.bf16.mxu0 0
      %893 = vmatpush1.bf16.msra.mxu0 0
      %894 = vmatprep.subr.bf16.mxu0 0
      %895 = vmatpush1.bf16.msra.mxu0 0
      %896 = vmatprep.subr.bf16.mxu0 0
      %897 = vmatpush1.bf16.msra.mxu0 0
      %898 = vmatprep.subr.bf16.mxu0 0
      %899 = vmatpush1.bf16.msra.mxu0 0
      %900 = vmatprep.subr.bf16.mxu0 0
      %901 = vmatpush1.bf16.msra.mxu0 0
      %902 = vmatprep.subr.bf16.mxu0 0
      %903 = vmatpush1.bf16.msra.mxu0 0
      %904 = vmatprep.subr.bf16.mxu0 0
      %905 = vmatpush1.bf16.msra.mxu0 0
      %906 = vmatprep.subr.bf16.mxu0 0
      %907 = vmatpush1.bf16.msra.mxu0 0
      %908 = vmatprep.subr.bf16.mxu0 0
      %909 = vmatpush1.bf16.msra.mxu0 0
      %910 = vmatprep.subr.bf16.mxu0 0
      %911 = vmatpush1.bf16.msra.mxu0 0
      %912 = vmatprep.mubr.bf16.mxu0 0
      %913 = vmatmul.mubr.bf16.gmra.mrb[0].mxu0 %v854
      %v914 = vpop.f32.mrb[0].mxu0
      %v915 = vadd.f32 0.0, %v914
      %v916 = vpop.f32.mrb[0].mxu0
      %v917 = vpop.f32.mrb[0].mxu0
      %v918 = vadd.f32 0.0, %v917
      %v919 = vpop.f32.mrb[0].mxu0
      %920 = vmatprep.mubr.bf16.mxu0 0
      %921 = vmatmul.mubr.bf16.gmra.mrb[0].mxu0 %v857
      %v922 = vpop.f32.mrb[0].mxu0
      %v923 = vadd.f32 0.0, %v922
      %v924 = vpop.f32.mrb[0].mxu0
      %v925 = vpop.f32.mrb[0].mxu0
      %v926 = vadd.f32 0.0, %v925
      %v927 = vpop.f32.mrb[0].mxu0
      %928 = vmatprep.mubr.bf16.mxu0 0
      %929 = vmatmul.mubr.bf16.gmra.mrb[0].mxu0 %v860
      %v930 = vpop.f32.mrb[0].mxu0
      %v931 = vadd.f32 0.0, %v930
      %v932 = vpop.f32.mrb[0].mxu0
      %v933 = vpop.f32.mrb[0].mxu0
      %v934 = vadd.f32 0.0, %v933
      %v935 = vpop.f32.mrb[0].mxu0
      %936 = vmatprep.mubr.bf16.mxu0 0
      %937 = vmatmul.mubr.bf16.gmra.mrb[0].mxu0 %v863
      %v938 = vpop.f32.mrb[0].mxu0
      %v939 = vadd.f32 0.0, %v938
      %v940 = vpop.f32.mrb[0].mxu0
      %v941 = vpop.f32.mrb[0].mxu0
      %v942 = vadd.f32 0.0, %v941
      %v943 = vpop.f32.mrb[0].mxu0
      %944 = vmatprep.mubr.bf16.mxu0 0
      %945 = vmatmul.mubr.bf16.gmra.mrb[0].mxu0 %v866
      %v946 = vpop.f32.mrb[0].mxu0
      %v947 = vadd.f32 0.0, %v946
      %v948 = vpop.f32.mrb[0].mxu0
      %v949 = vpop.f32.mrb[0].mxu0
      %v950 = vadd.f32 0.0, %v949
      %v951 = vpop.f32.mrb[0].mxu0
      %952 = vmatprep.mubr.bf16.mxu0 0
      %953 = vmatmul.mubr.bf16.gmra.mrb[0].mxu0 %v869
      %v954 = vpop.f32.mrb[0].mxu0
      %v955 = vadd.f32 0.0, %v954
      %v956 = vpop.f32.mrb[0].mxu0
      %v957 = vpop.f32.mrb[0].mxu0
      %v958 = vadd.f32 0.0, %v957
      %v959 = vpop.f32.mrb[0].mxu0
      %960 = vmatprep.mubr.bf16.mxu0 0
      %961 = vmatmul.mubr.bf16.gmra.mrb[0].mxu0 %v872
      %v962 = vpop.f32.mrb[0].mxu0
      %v963 = vadd.f32 0.0, %v962
      %v964 = vpop.f32.mrb[0].mxu0
      %v965 = vpop.f32.mrb[0].mxu0
      %v966 = vadd.f32 0.0, %v965
      %v967 = vpop.f32.mrb[0].mxu0
      %968 = vmatprep.mubr.bf16.mxu0 0
      %969 = vmatmul.mubr.bf16.gmra.mrb[0].mxu0 %v875
      %v970 = vpop.f32.mrb[0].mxu0
      %v971 = vadd.f32 0.0, %v970
      %v972 = vpop.f32.mrb[0].mxu0
      %v973 = vpop.f32.mrb[0].mxu0
      %v974 = vadd.f32 0.0, %v973
      %v975 = vpop.f32.mrb[0].mxu0
      %976 = vdwg.mxu0
      %v977 = vadd.f32 %v682, %v915
      %v978 = vadd.f32 %v685, %v918
      %v979 = vadd.f32 %v690, %v923
      %v980 = vadd.f32 %v693, %v926
      %v981 = vadd.f32 %v698, %v931
      %v982 = vadd.f32 %v701, %v934
      %v983 = vadd.f32 %v706, %v939
      %v984 = vadd.f32 %v709, %v942
      %v985 = vadd.f32 %v714, %v947
      %v986 = vadd.f32 %v717, %v950
      %v987 = vadd.f32 %v722, %v955
      %v988 = vadd.f32 %v725, %v958
      %v989 = vadd.f32 %v730, %v963
      %v990 = vadd.f32 %v733, %v966
      %v991 = vadd.f32 %v738, %v971
      %v992 = vadd.f32 %v741, %v974
      %s993 = scalar_lea.vmem %s197, 12
      %v994 = vld [vmem:[%s993] sm:$0xf]
      %v995 = vld [vmem:[%s993 + $0x4] sm:$0xf]
      %v996 = vld [vmem:[%s993 + $0xc] sm:$0xf]
      %v997 = vld [vmem:[%s993 + $0x10] sm:$0xf]
      %v998 = vld [vmem:[%s993 + $0x18] sm:$0xf]
      %v999 = vld [vmem:[%s993 + $0x1c] sm:$0xf]
      %v1000 = vld [vmem:[%s993 + $0x24] sm:$0xf]
      %v1001 = vld [vmem:[%s993 + $0x28] sm:$0xf]
      %v1002 = vld [vmem:[%s993 + $0x30] sm:$0xf]
      %v1003 = vld [vmem:[%s993 + $0x34] sm:$0xf]
      %v1004 = vld [vmem:[%s993 + $0x3c] sm:$0xf]
      %v1005 = vld [vmem:[%s993 + $0x40] sm:$0xf]
      %v1006 = vld [vmem:[%s993 + $0x48] sm:$0xf]
      %v1007 = vld [vmem:[%s993 + $0x4c] sm:$0xf]
      %v1008 = vld [vmem:[%s993 + $0x54] sm:$0xf]
      %v1009 = vld [vmem:[%s993 + $0x58] sm:$0xf]
      %s1010 = scalar_lea.vmem %s1, 12
      %v1011 = vld [vmem:[%s1010] sm:$0xf]
      %v1028 = vunpack.c.l.b16 %v994
      %v1029 = vunpack.c.l.b16 %v995
      %v1030 = vunpack.c.l.b16 %v996
      %v1031 = vunpack.c.l.b16 %v997
      %v1032 = vunpack.c.l.b16 %v998
      %v1033 = vunpack.c.l.b16 %v999
      %v1034 = vunpack.c.l.b16 %v1000
      %v1035 = vunpack.c.l.b16 %v1001
      %v1036 = vunpack.c.l.b16 %v1002
      %v1037 = vunpack.c.l.b16 %v1003
      %v1038 = vunpack.c.l.b16 %v1004
      %v1039 = vunpack.c.l.b16 %v1005
      %v1040 = vunpack.c.l.b16 %v1006
      %v1041 = vunpack.c.l.b16 %v1007
      %v1042 = vunpack.c.l.b16 %v1008
      %v1043 = vunpack.c.l.b16 %v1009
      %v1044 = vpack.c.b16 %v1029, %v1028
      %v1045 = vpack.c.b16 %v1031, %v1030
      %v1046 = vpack.c.b16 %v1033, %v1032
      %v1047 = vpack.c.b16 %v1035, %v1034
      %v1048 = vpack.c.b16 %v1037, %v1036
      %v1049 = vpack.c.b16 %v1039, %v1038
      %v1050 = vpack.c.b16 %v1041, %v1040
      %v1051 = vpack.c.b16 %v1043, %v1042
      %v1053 = vsel %vm454, %v1044, 0
      %v1056 = vsel %vm454, %v1045, 0
      %v1059 = vsel %vm454, %v1046, 0
      %v1062 = vsel %vm454, %v1047, 0
      %v1065 = vsel %vm454, %v1048, 0
      %v1068 = vsel %vm454, %v1049, 0
      %v1071 = vsel %vm454, %v1050, 0
      %v1074 = vsel %vm454, %v1051, 0
      %v1077 = vsel %vm479, %v1011, 0
      %1079 = vmatprep.subr.bf16.mxu0 0
      %1080 = vmatpush1.bf16.msra.mxu0 %v1077
      %1081 = vmatprep.subr.bf16.mxu0 0
      %1082 = vmatpush1.bf16.msra.mxu0 0
      %1083 = vmatprep.subr.bf16.mxu0 0
      %1084 = vmatpush1.bf16.msra.mxu0 0
      %1085 = vmatprep.subr.bf16.mxu0 0
      %1086 = vmatpush1.bf16.msra.mxu0 0
      %1087 = vmatprep.subr.bf16.mxu0 0
      %1088 = vmatpush1.bf16.msra.mxu0 0
      %1089 = vmatprep.subr.bf16.mxu0 0
      %1090 = vmatpush1.bf16.msra.mxu0 0
      %1091 = vmatprep.subr.bf16.mxu0 0
      %1092 = vmatpush1.bf16.msra.mxu0 0
      %1093 = vmatprep.subr.bf16.mxu0 0
      %1094 = vmatpush1.bf16.msra.mxu0 0
      %1095 = vmatprep.subr.bf16.mxu0 0
      %1096 = vmatpush1.bf16.msra.mxu0 0
      %1097 = vmatprep.subr.bf16.mxu0 0
      %1098 = vmatpush1.bf16.msra.mxu0 0
      %1099 = vmatprep.subr.bf16.mxu0 0
      %1100 = vmatpush1.bf16.msra.mxu0 0
      %1101 = vmatprep.subr.bf16.mxu0 0
      %1102 = vmatpush1.bf16.msra.mxu0 0
      %1103 = vmatprep.subr.bf16.mxu0 0
      %1104 = vmatpush1.bf16.msra.mxu0 0
      %1105 = vmatprep.subr.bf16.mxu0 0
      %1106 = vmatpush1.bf16.msra.mxu0 0
      %1107 = vmatprep.subr.bf16.mxu0 0
      %1108 = vmatpush1.bf16.msra.mxu0 0
      %1109 = vmatprep.subr.bf16.mxu0 0
      %1110 = vmatpush1.bf16.msra.mxu0 0
      %1111 = vmatprep.mubr.bf16.mxu0 0
      %1112 = vmatmul.mubr.bf16.gmra.mrb[0].mxu0 %v1053
      %v1113 = vpop.f32.mrb[0].mxu0
      %v1114 = vadd.f32 0.0, %v1113
      %v1115 = vpop.f32.mrb[0].mxu0
      %v1116 = vpop.f32.mrb[0].mxu0
      %v1117 = vadd.f32 0.0, %v1116
      %v1118 = vpop.f32.mrb[0].mxu0
      %1119 = vmatprep.mubr.bf16.mxu0 0
      %1120 = vmatmul.mubr.bf16.gmra.mrb[0].mxu0 %v1056
      %v1121 = vpop.f32.mrb[0].mxu0
      %v1122 = vadd.f32 0.0, %v1121
      %v1123 = vpop.f32.mrb[0].mxu0
      %v1124 = vpop.f32.mrb[0].mxu0
      %v1125 = vadd.f32 0.0, %v1124
      %v1126 = vpop.f32.mrb[0].mxu0
      %1127 = vmatprep.mubr.bf16.mxu0 0
      %1128 = vmatmul.mubr.bf16.gmra.mrb[0].mxu0 %v1059
      %v1129 = vpop.f32.mrb[0].mxu0
      %v1130 = vadd.f32 0.0, %v1129
      %v1131 = vpop.f32.mrb[0].mxu0
      %v1132 = vpop.f32.mrb[0].mxu0
      %v1133 = vadd.f32 0.0, %v1132
      %v1134 = vpop.f32.mrb[0].mxu0
      %1135 = vmatprep.mubr.bf16.mxu0 0
      %1136 = vmatmul.mubr.bf16.gmra.mrb[0].mxu0 %v1062
      %v1137 = vpop.f32.mrb[0].mxu0
      %v1138 = vadd.f32 0.0, %v1137
      %v1139 = vpop.f32.mrb[0].mxu0
      %v1140 = vpop.f32.mrb[0].mxu0
      %v1141 = vadd.f32 0.0, %v1140
      %v1142 = vpop.f32.mrb[0].mxu0
      %1143 = vmatprep.mubr.bf16.mxu0 0
      %1144 = vmatmul.mubr.bf16.gmra.mrb[0].mxu0 %v1065
      %v1145 = vpop.f32.mrb[0].mxu0
      %v1146 = vadd.f32 0.0, %v1145
      %v1147 = vpop.f32.mrb[0].mxu0
      %v1148 = vpop.f32.mrb[0].mxu0
      %v1149 = vadd.f32 0.0, %v1148
      %v1150 = vpop.f32.mrb[0].mxu0
      %1151 = vmatprep.mubr.bf16.mxu0 0
      %1152 = vmatmul.mubr.bf16.gmra.mrb[0].mxu0 %v1068
      %v1153 = vpop.f32.mrb[0].mxu0
      %v1154 = vadd.f32 0.0, %v1153
      %v1155 = vpop.f32.mrb[0].mxu0
      %v1156 = vpop.f32.mrb[0].mxu0
      %v1157 = vadd.f32 0.0, %v1156
      %v1158 = vpop.f32.mrb[0].mxu0
      %1159 = vmatprep.mubr.bf16.mxu0 0
      %1160 = vmatmul.mubr.bf16.gmra.mrb[0].mxu0 %v1071
      %v1161 = vpop.f32.mrb[0].mxu0
      %v1162 = vadd.f32 0.0, %v1161
      %v1163 = vpop.f32.mrb[0].mxu0
      %v1164 = vpop.f32.mrb[0].mxu0
      %v1165 = vadd.f32 0.0, %v1164
      %v1166 = vpop.f32.mrb[0].mxu0
      %1167 = vmatprep.mubr.bf16.mxu0 0
      %1168 = vmatmul.mubr.bf16.gmra.mrb[0].mxu0 %v1074
      %v1169 = vpop.f32.mrb[0].mxu0
      %v1170 = vadd.f32 0.0, %v1169
      %v1171 = vpop.f32.mrb[0].mxu0
      %v1172 = vpop.f32.mrb[0].mxu0
      %v1173 = vadd.f32 0.0, %v1172
      %v1174 = vpop.f32.mrb[0].mxu0
      %1175 = vdwg.mxu0
      %v1176 = vadd.f32 %v977, %v1114
      %v1177 = vadd.f32 %v978, %v1117
      %v1178 = vadd.f32 %v979, %v1122
      %v1179 = vadd.f32 %v980, %v1125
      %v1180 = vadd.f32 %v981, %v1130
      %v1181 = vadd.f32 %v982, %v1133
      %v1182 = vadd.f32 %v983, %v1138
      %v1183 = vadd.f32 %v984, %v1141
      %v1184 = vadd.f32 %v985, %v1146
      %v1185 = vadd.f32 %v986, %v1149
      %v1186 = vadd.f32 %v987, %v1154
      %v1187 = vadd.f32 %v988, %v1157
      %v1188 = vadd.f32 %v989, %v1162
      %v1189 = vadd.f32 %v990, %v1165
      %v1190 = vadd.f32 %v991, %v1170
      %v1191 = vadd.f32 %v992, %v1173
      %v1192 = vld [vmem:[%s993] sm:$0xf]
      %v1193 = vld [vmem:[%s993 + $0x4] sm:$0xf]
      %v1194 = vld [vmem:[%s993 + $0x8] sm:$0x1]
      %v1195 = vld [vmem:[%s993 + $0xc] sm:$0xf]
      %v1196 = vld [vmem:[%s993 + $0x10] sm:$0xf]
      %v1197 = vld [vmem:[%s993 + $0x14] sm:$0x1]
      %v1198 = vld [vmem:[%s993 + $0x18] sm:$0xf]
      %v1199 = vld [vmem:[%s993 + $0x1c] sm:$0xf]
      %v1200 = vld [vmem:[%s993 + $0x20] sm:$0x1]
      %v1201 = vld [vmem:[%s993 + $0x24] sm:$0xf]
      %v1202 = vld [vmem:[%s993 + $0x28] sm:$0xf]
      %v1203 = vld [vmem:[%s993 + $0x2c] sm:$0x1]
      %v1204 = vld [vmem:[%s993 + $0x30] sm:$0xf]
      %v1205 = vld [vmem:[%s993 + $0x34] sm:$0xf]
      %v1206 = vld [vmem:[%s993 + $0x38] sm:$0x1]
      %v1207 = vld [vmem:[%s993 + $0x3c] sm:$0xf]
      %v1208 = vld [vmem:[%s993 + $0x40] sm:$0xf]
      %v1209 = vld [vmem:[%s993 + $0x44] sm:$0x1]
      %v1210 = vld [vmem:[%s993 + $0x48] sm:$0xf]
      %v1211 = vld [vmem:[%s993 + $0x4c] sm:$0xf]
      %v1212 = vld [vmem:[%s993 + $0x50] sm:$0x1]
      %v1213 = vld [vmem:[%s993 + $0x54] sm:$0xf]
      %v1214 = vld [vmem:[%s993 + $0x58] sm:$0xf]
      %v1215 = vld [vmem:[%s993 + $0x5c] sm:$0x1]
      %s1216 = scalar_lea.vmem %s1, 16
      %v1217 = vld [vmem:[%s1216] sm:$0xf]
      %v1219 = vshrl.u32 %v1192, 16
      %v1221 = vrot.slane %v1219, 4
      %v1222 = vshll.u32 %v1192, 16
      %v1224 = vrot.slane %v1222, 5
      %v1225 = vor.u32 %v1221, %v1224
      %v1226 = vrot.slane %v1225, 4
      %v1228 = vshll.u32 %v1193, 16
      %v1230 = vrot.slane %v1228, 5
      %v1231 = vsel %vm237, %v1226, %v1230
      %v1232 = vshrl.u32 %v1193, 16
      %v1234 = vrot.slane %v1232, 4
      %v1235 = vor.u32 %v1234, %v1230
      %v1236 = vrot.slane %v1235, 4
      %v1238 = vshll.u32 %v1194, 16
      %v1240 = vrot.slane %v1238, 5
      %v1241 = vsel %vm237, %v1236, %v1240
      %v1243 = vshrl.u32 %v1195, 16
      %v1245 = vrot.slane %v1243, 4
      %v1246 = vshll.u32 %v1195, 16
      %v1248 = vrot.slane %v1246, 5
      %v1249 = vor.u32 %v1245, %v1248
      %v1250 = vrot.slane %v1249, 4
      %v1252 = vshll.u32 %v1196, 16
      %v1254 = vrot.slane %v1252, 5
      %v1255 = vsel %vm237, %v1250, %v1254
      %v1256 = vshrl.u32 %v1196, 16
      %v1258 = vrot.slane %v1256, 4
      %v1259 = vor.u32 %v1258, %v1254
      %v1260 = vrot.slane %v1259, 4
      %v1262 = vshll.u32 %v1197, 16
      %v1264 = vrot.slane %v1262, 5
      %v1265 = vsel %vm237, %v1260, %v1264
      %v1267 = vshrl.u32 %v1198, 16
      %v1269 = vrot.slane %v1267, 4
      %v1270 = vshll.u32 %v1198, 16
      %v1272 = vrot.slane %v1270, 5
      %v1273 = vor.u32 %v1269, %v1272
      %v1274 = vrot.slane %v1273, 4
      %v1276 = vshll.u32 %v1199, 16
      %v1278 = vrot.slane %v1276, 5
      %v1279 = vsel %vm237, %v1274, %v1278
      %v1280 = vshrl.u32 %v1199, 16
      %v1282 = vrot.slane %v1280, 4
      %v1283 = vor.u32 %v1282, %v1278
      %v1284 = vrot.slane %v1283, 4
      %v1286 = vshll.u32 %v1200, 16
      %v1288 = vrot.slane %v1286, 5
      %v1289 = vsel %vm237, %v1284, %v1288
      %v1291 = vshrl.u32 %v1201, 16
      %v1293 = vrot.slane %v1291, 4
      %v1294 = vshll.u32 %v1201, 16
      %v1296 = vrot.slane %v1294, 5
      %v1297 = vor.u32 %v1293, %v1296
      %v1298 = vrot.slane %v1297, 4
      %v1300 = vshll.u32 %v1202, 16
      %v1302 = vrot.slane %v1300, 5
      %v1303 = vsel %vm237, %v1298, %v1302
      %v1304 = vshrl.u32 %v1202, 16
      %v1306 = vrot.slane %v1304, 4
      %v1307 = vor.u32 %v1306, %v1302
      %v1308 = vrot.slane %v1307, 4
      %v1310 = vshll.u32 %v1203, 16
      %v1312 = vrot.slane %v1310, 5
      %v1313 = vsel %vm237, %v1308, %v1312
      %v1315 = vshrl.u32 %v1204, 16
      %v1317 = vrot.slane %v1315, 4
      %v1318 = vshll.u32 %v1204, 16
      %v1320 = vrot.slane %v1318, 5
      %v1321 = vor.u32 %v1317, %v1320
      %v1322 = vrot.slane %v1321, 4
      %v1324 = vshll.u32 %v1205, 16
      %v1326 = vrot.slane %v1324, 5
      %v1327 = vsel %vm237, %v1322, %v1326
      %v1328 = vshrl.u32 %v1205, 16
      %v1330 = vrot.slane %v1328, 4
      %v1331 = vor.u32 %v1330, %v1326
      %v1332 = vrot.slane %v1331, 4
      %v1334 = vshll.u32 %v1206, 16
      %v1336 = vrot.slane %v1334, 5
      %v1337 = vsel %vm237, %v1332, %v1336
      %v1339 = vshrl.u32 %v1207, 16
      %v1341 = vrot.slane %v1339, 4
      %v1342 = vshll.u32 %v1207, 16
      %v1344 = vrot.slane %v1342, 5
      %v1345 = vor.u32 %v1341, %v1344
      %v1346 = vrot.slane %v1345, 4
      %v1348 = vshll.u32 %v1208, 16
      %v1350 = vrot.slane %v1348, 5
      %v1351 = vsel %vm237, %v1346, %v1350
      %v1352 = vshrl.u32 %v1208, 16
      %v1354 = vrot.slane %v1352, 4
      %v1355 = vor.u32 %v1354, %v1350
      %v1356 = vrot.slane %v1355, 4
      %v1358 = vshll.u32 %v1209, 16
      %v1360 = vrot.slane %v1358, 5
      %v1361 = vsel %vm237, %v1356, %v1360
      %v1363 = vshrl.u32 %v1210, 16
      %v1365 = vrot.slane %v1363, 4
      %v1366 = vshll.u32 %v1210, 16
      %v1368 = vrot.slane %v1366, 5
      %v1369 = vor.u32 %v1365, %v1368
      %v1370 = vrot.slane %v1369, 4
      %v1372 = vshll.u32 %v1211, 16
      %v1374 = vrot.slane %v1372, 5
      %v1375 = vsel %vm237, %v1370, %v1374
      %v1376 = vshrl.u32 %v1211, 16
      %v1378 = vrot.slane %v1376, 4
      %v1379 = vor.u32 %v1378, %v1374
      %v1380 = vrot.slane %v1379, 4
      %v1382 = vshll.u32 %v1212, 16
      %v1384 = vrot.slane %v1382, 5
      %v1385 = vsel %vm237, %v1380, %v1384
      %v1387 = vshrl.u32 %v1213, 16
      %v1389 = vrot.slane %v1387, 4
      %v1390 = vshll.u32 %v1213, 16
      %v1392 = vrot.slane %v1390, 5
      %v1393 = vor.u32 %v1389, %v1392
      %v1394 = vrot.slane %v1393, 4
      %v1396 = vshll.u32 %v1214, 16
      %v1398 = vrot.slane %v1396, 5
      %v1399 = vsel %vm237, %v1394, %v1398
      %v1400 = vshrl.u32 %v1214, 16
      %v1402 = vrot.slane %v1400, 4
      %v1403 = vor.u32 %v1402, %v1398
      %v1404 = vrot.slane %v1403, 4
      %v1406 = vshll.u32 %v1215, 16
      %v1408 = vrot.slane %v1406, 5
      %v1409 = vsel %vm237, %v1404, %v1408
      %v1410 = vunpack.c.l.b16 %v1231
      %v1411 = vunpack.c.l.b16 %v1241
      %v1412 = vunpack.c.l.b16 %v1255
      %v1413 = vunpack.c.l.b16 %v1265
      %v1414 = vunpack.c.l.b16 %v1279
      %v1415 = vunpack.c.l.b16 %v1289
      %v1416 = vunpack.c.l.b16 %v1303
      %v1417 = vunpack.c.l.b16 %v1313
      %v1418 = vunpack.c.l.b16 %v1327
      %v1419 = vunpack.c.l.b16 %v1337
      %v1420 = vunpack.c.l.b16 %v1351
      %v1421 = vunpack.c.l.b16 %v1361
      %v1422 = vunpack.c.l.b16 %v1375
      %v1423 = vunpack.c.l.b16 %v1385
      %v1424 = vunpack.c.l.b16 %v1399
      %v1425 = vunpack.c.l.b16 %v1409
      %v1426 = vpack.c.b16 %v1411, %v1410
      %v1427 = vpack.c.b16 %v1413, %v1412
      %v1428 = vpack.c.b16 %v1415, %v1414
      %v1429 = vpack.c.b16 %v1417, %v1416
      %v1430 = vpack.c.b16 %v1419, %v1418
      %v1431 = vpack.c.b16 %v1421, %v1420
      %v1432 = vpack.c.b16 %v1423, %v1422
      %v1433 = vpack.c.b16 %v1425, %v1424
      %v1435 = vsel %vm454, %v1426, 0
      %v1438 = vsel %vm454, %v1427, 0
      %v1441 = vsel %vm454, %v1428, 0
      %v1444 = vsel %vm454, %v1429, 0
      %v1447 = vsel %vm454, %v1430, 0
      %v1450 = vsel %vm454, %v1431, 0
      %v1453 = vsel %vm454, %v1432, 0
      %v1456 = vsel %vm454, %v1433, 0
      %v1459 = vsel %vm479, %v1217, 0
      %1461 = vmatprep.subr.bf16.mxu0 0
      %1462 = vmatpush1.bf16.msra.mxu0 %v1459
      %1463 = vmatprep.subr.bf16.mxu0 0
      %1464 = vmatpush1.bf16.msra.mxu0 0
      %1465 = vmatprep.subr.bf16.mxu0 0
      %1466 = vmatpush1.bf16.msra.mxu0 0
      %1467 = vmatprep.subr.bf16.mxu0 0
      %1468 = vmatpush1.bf16.msra.mxu0 0
      %1469 = vmatprep.subr.bf16.mxu0 0
      %1470 = vmatpush1.bf16.msra.mxu0 0
      %1471 = vmatprep.subr.bf16.mxu0 0
      %1472 = vmatpush1.bf16.msra.mxu0 0
      %1473 = vmatprep.subr.bf16.mxu0 0
      %1474 = vmatpush1.bf16.msra.mxu0 0
      %1475 = vmatprep.subr.bf16.mxu0 0
      %1476 = vmatpush1.bf16.msra.mxu0 0
      %1477 = vmatprep.subr.bf16.mxu0 0
      %1478 = vmatpush1.bf16.msra.mxu0 0
      %1479 = vmatprep.subr.bf16.mxu0 0
      %1480 = vmatpush1.bf16.msra.mxu0 0
      %1481 = vmatprep.subr.bf16.mxu0 0
      %1482 = vmatpush1.bf16.msra.mxu0 0
      %1483 = vmatprep.subr.bf16.mxu0 0
      %1484 = vmatpush1.bf16.msra.mxu0 0
      %1485 = vmatprep.subr.bf16.mxu0 0
      %1486 = vmatpush1.bf16.msra.mxu0 0
      %1487 = vmatprep.subr.bf16.mxu0 0
      %1488 = vmatpush1.bf16.msra.mxu0 0
      %1489 = vmatprep.subr.bf16.mxu0 0
      %1490 = vmatpush1.bf16.msra.mxu0 0
      %1491 = vmatprep.subr.bf16.mxu0 0
      %1492 = vmatpush1.bf16.msra.mxu0 0
      %1493 = vmatprep.mubr.bf16.mxu0 0
      %1494 = vmatmul.mubr.bf16.gmra.mrb[0].mxu0 %v1435
      %v1495 = vpop.f32.mrb[0].mxu0
      %v1496 = vadd.f32 0.0, %v1495
      %v1497 = vpop.f32.mrb[0].mxu0
      %v1498 = vpop.f32.mrb[0].mxu0
      %v1499 = vadd.f32 0.0, %v1498
      %v1500 = vpop.f32.mrb[0].mxu0
      %1501 = vmatprep.mubr.bf16.mxu0 0
      %1502 = vmatmul.mubr.bf16.gmra.mrb[0].mxu0 %v1438
      %v1503 = vpop.f32.mrb[0].mxu0
      %v1504 = vadd.f32 0.0, %v1503
      %v1505 = vpop.f32.mrb[0].mxu0
      %v1506 = vpop.f32.mrb[0].mxu0
      %v1507 = vadd.f32 0.0, %v1506
      %v1508 = vpop.f32.mrb[0].mxu0
      %1509 = vmatprep.mubr.bf16.mxu0 0
      %1510 = vmatmul.mubr.bf16.gmra.mrb[0].mxu0 %v1441
      %v1511 = vpop.f32.mrb[0].mxu0
      %v1512 = vadd.f32 0.0, %v1511
      %v1513 = vpop.f32.mrb[0].mxu0
      %v1514 = vpop.f32.mrb[0].mxu0
      %v1515 = vadd.f32 0.0, %v1514
      %v1516 = vpop.f32.mrb[0].mxu0
      %1517 = vmatprep.mubr.bf16.mxu0 0
      %1518 = vmatmul.mubr.bf16.gmra.mrb[0].mxu0 %v1444
      %v1519 = vpop.f32.mrb[0].mxu0
      %v1520 = vadd.f32 0.0, %v1519
      %v1521 = vpop.f32.mrb[0].mxu0
      %v1522 = vpop.f32.mrb[0].mxu0
      %v1523 = vadd.f32 0.0, %v1522
      %v1524 = vpop.f32.mrb[0].mxu0
      %1525 = vmatprep.mubr.bf16.mxu0 0
      %1526 = vmatmul.mubr.bf16.gmra.mrb[0].mxu0 %v1447
      %v1527 = vpop.f32.mrb[0].mxu0
      %v1528 = vadd.f32 0.0, %v1527
      %v1529 = vpop.f32.mrb[0].mxu0
      %v1530 = vpop.f32.mrb[0].mxu0
      %v1531 = vadd.f32 0.0, %v1530
      %v1532 = vpop.f32.mrb[0].mxu0
      %1533 = vmatprep.mubr.bf16.mxu0 0
      %1534 = vmatmul.mubr.bf16.gmra.mrb[0].mxu0 %v1450
      %v1535 = vpop.f32.mrb[0].mxu0
      %v1536 = vadd.f32 0.0, %v1535
      %v1537 = vpop.f32.mrb[0].mxu0
      %v1538 = vpop.f32.mrb[0].mxu0
      %v1539 = vadd.f32 0.0, %v1538
      %v1540 = vpop.f32.mrb[0].mxu0
      %1541 = vmatprep.mubr.bf16.mxu0 0
      %1542 = vmatmul.mubr.bf16.gmra.mrb[0].mxu0 %v1453
      %v1543 = vpop.f32.mrb[0].mxu0
      %v1544 = vadd.f32 0.0, %v1543
      %v1545 = vpop.f32.mrb[0].mxu0
      %v1546 = vpop.f32.mrb[0].mxu0
      %v1547 = vadd.f32 0.0, %v1546
      %v1548 = vpop.f32.mrb[0].mxu0
      %1549 = vmatprep.mubr.bf16.mxu0 0
      %1550 = vmatmul.mubr.bf16.gmra.mrb[0].mxu0 %v1456
      %v1551 = vpop.f32.mrb[0].mxu0
      %v1552 = vadd.f32 0.0, %v1551
      %v1553 = vpop.f32.mrb[0].mxu0
      %v1554 = vpop.f32.mrb[0].mxu0
      %v1555 = vadd.f32 0.0, %v1554
      %v1556 = vpop.f32.mrb[0].mxu0
      %1557 = vdwg.mxu0
      %v1558 = vadd.f32 %v1176, %v1496
      %v1559 = vadd.f32 %v1177, %v1499
      %v1560 = vadd.f32 %v1178, %v1504
      %v1561 = vadd.f32 %v1179, %v1507
      %v1562 = vadd.f32 %v1180, %v1512
      %v1563 = vadd.f32 %v1181, %v1515
      %v1564 = vadd.f32 %v1182, %v1520
      %v1565 = vadd.f32 %v1183, %v1523
      %v1566 = vadd.f32 %v1184, %v1528
      %v1567 = vadd.f32 %v1185, %v1531
      %v1568 = vadd.f32 %v1186, %v1536
      %v1569 = vadd.f32 %v1187, %v1539
      %v1570 = vadd.f32 %v1188, %v1544
      %v1571 = vadd.f32 %v1189, %v1547
      %v1572 = vadd.f32 %v1190, %v1552
      %v1573 = vadd.f32 %v1191, %v1555
      %v1574 = vld [vmem:[%s993] sm:$0xe]
      %v1575 = vld [vmem:[%s993 + $0xc] sm:$0xe]
      %v1576 = vld [vmem:[%s993 + $0x18] sm:$0xe]
      %v1577 = vld [vmem:[%s993 + $0x24] sm:$0xe]
      %v1578 = vld [vmem:[%s993 + $0x30] sm:$0xe]
      %v1579 = vld [vmem:[%s993 + $0x3c] sm:$0xe]
      %v1580 = vld [vmem:[%s993 + $0x48] sm:$0xe]
      %v1581 = vld [vmem:[%s993 + $0x54] sm:$0xe]
      %s1582 = scalar_lea.vmem %s1, 20
      %v1583 = vld [vmem:[%s1582] sm:$0xf]
      %v1608 = vrot.slane %v1574, 5
      %v1609 = vrot.slane %v1608, 4
      %v1610 = vrot.slane %v1193, 5
      %v1611 = vsel %vm772, %v1609, %v1610
      %v1612 = vrot.slane %v1610, 4
      %v1613 = vrot.slane %v1194, 5
      %v1614 = vsel %vm772, %v1612, %v1613
      %v1615 = vrot.slane %v1575, 5
      %v1616 = vrot.slane %v1615, 4
      %v1617 = vrot.slane %v1196, 5
      %v1618 = vsel %vm772, %v1616, %v1617
      %v1619 = vrot.slane %v1617, 4
      %v1620 = vrot.slane %v1197, 5
      %v1621 = vsel %vm772, %v1619, %v1620
      %v1622 = vrot.slane %v1576, 5
      %v1623 = vrot.slane %v1622, 4
      %v1624 = vrot.slane %v1199, 5
      %v1625 = vsel %vm772, %v1623, %v1624
      %v1626 = vrot.slane %v1624, 4
      %v1627 = vrot.slane %v1200, 5
      %v1628 = vsel %vm772, %v1626, %v1627
      %v1629 = vrot.slane %v1577, 5
      %v1630 = vrot.slane %v1629, 4
      %v1631 = vrot.slane %v1202, 5
      %v1632 = vsel %vm772, %v1630, %v1631
      %v1633 = vrot.slane %v1631, 4
      %v1634 = vrot.slane %v1203, 5
      %v1635 = vsel %vm772, %v1633, %v1634
      %v1636 = vrot.slane %v1578, 5
      %v1637 = vrot.slane %v1636, 4
      %v1638 = vrot.slane %v1205, 5
      %v1639 = vsel %vm772, %v1637, %v1638
      %v1640 = vrot.slane %v1638, 4
      %v1641 = vrot.slane %v1206, 5
      %v1642 = vsel %vm772, %v1640, %v1641
      %v1643 = vrot.slane %v1579, 5
      %v1644 = vrot.slane %v1643, 4
      %v1645 = vrot.slane %v1208, 5
      %v1646 = vsel %vm772, %v1644, %v1645
      %v1647 = vrot.slane %v1645, 4
      %v1648 = vrot.slane %v1209, 5
      %v1649 = vsel %vm772, %v1647, %v1648
      %v1650 = vrot.slane %v1580, 5
      %v1651 = vrot.slane %v1650, 4
      %v1652 = vrot.slane %v1211, 5
      %v1653 = vsel %vm772, %v1651, %v1652
      %v1654 = vrot.slane %v1652, 4
      %v1655 = vrot.slane %v1212, 5
      %v1656 = vsel %vm772, %v1654, %v1655
      %v1657 = vrot.slane %v1581, 5
      %v1658 = vrot.slane %v1657, 4
      %v1659 = vrot.slane %v1214, 5
      %v1660 = vsel %vm772, %v1658, %v1659
      %v1661 = vrot.slane %v1659, 4
      %v1662 = vrot.slane %v1215, 5
      %v1663 = vsel %vm772, %v1661, %v1662
      %v1664 = vunpack.c.l.b16 %v1611
      %v1665 = vunpack.c.l.b16 %v1614
      %v1666 = vunpack.c.l.b16 %v1618
      %v1667 = vunpack.c.l.b16 %v1621
      %v1668 = vunpack.c.l.b16 %v1625
      %v1669 = vunpack.c.l.b16 %v1628
      %v1670 = vunpack.c.l.b16 %v1632
      %v1671 = vunpack.c.l.b16 %v1635
      %v1672 = vunpack.c.l.b16 %v1639
      %v1673 = vunpack.c.l.b16 %v1642
      %v1674 = vunpack.c.l.b16 %v1646
      %v1675 = vunpack.c.l.b16 %v1649
      %v1676 = vunpack.c.l.b16 %v1653
      %v1677 = vunpack.c.l.b16 %v1656
      %v1678 = vunpack.c.l.b16 %v1660
      %v1679 = vunpack.c.l.b16 %v1663
      %v1680 = vpack.c.b16 %v1665, %v1664
      %v1681 = vpack.c.b16 %v1667, %v1666
      %v1682 = vpack.c.b16 %v1669, %v1668
      %v1683 = vpack.c.b16 %v1671, %v1670
      %v1684 = vpack.c.b16 %v1673, %v1672
      %v1685 = vpack.c.b16 %v1675, %v1674
      %v1686 = vpack.c.b16 %v1677, %v1676
      %v1687 = vpack.c.b16 %v1679, %v1678
      %v1689 = vsel %vm454, %v1680, 0
      %v1692 = vsel %vm454, %v1681, 0
      %v1695 = vsel %vm454, %v1682, 0
      %v1698 = vsel %vm454, %v1683, 0
      %v1701 = vsel %vm454, %v1684, 0
      %v1704 = vsel %vm454, %v1685, 0
      %v1707 = vsel %vm454, %v1686, 0
      %v1710 = vsel %vm454, %v1687, 0
      %v1713 = vsel %vm479, %v1583, 0
      %1715 = vmatprep.subr.bf16.mxu0 0
      %1716 = vmatpush1.bf16.msra.mxu0 %v1713
      %1717 = vmatprep.subr.bf16.mxu0 0
      %1718 = vmatpush1.bf16.msra.mxu0 0
      %1719 = vmatprep.subr.bf16.mxu0 0
      %1720 = vmatpush1.bf16.msra.mxu0 0
      %1721 = vmatprep.subr.bf16.mxu0 0
      %1722 = vmatpush1.bf16.msra.mxu0 0
      %1723 = vmatprep.subr.bf16.mxu0 0
      %1724 = vmatpush1.bf16.msra.mxu0 0
      %1725 = vmatprep.subr.bf16.mxu0 0
      %1726 = vmatpush1.bf16.msra.mxu0 0
      %1727 = vmatprep.subr.bf16.mxu0 0
      %1728 = vmatpush1.bf16.msra.mxu0 0
      %1729 = vmatprep.subr.bf16.mxu0 0
      %1730 = vmatpush1.bf16.msra.mxu0 0
      %1731 = vmatprep.subr.bf16.mxu0 0
      %1732 = vmatpush1.bf16.msra.mxu0 0
      %1733 = vmatprep.subr.bf16.mxu0 0
      %1734 = vmatpush1.bf16.msra.mxu0 0
      %1735 = vmatprep.subr.bf16.mxu0 0
      %1736 = vmatpush1.bf16.msra.mxu0 0
      %1737 = vmatprep.subr.bf16.mxu0 0
      %1738 = vmatpush1.bf16.msra.mxu0 0
      %1739 = vmatprep.subr.bf16.mxu0 0
      %1740 = vmatpush1.bf16.msra.mxu0 0
      %1741 = vmatprep.subr.bf16.mxu0 0
      %1742 = vmatpush1.bf16.msra.mxu0 0
      %1743 = vmatprep.subr.bf16.mxu0 0
      %1744 = vmatpush1.bf16.msra.mxu0 0
      %1745 = vmatprep.subr.bf16.mxu0 0
      %1746 = vmatpush1.bf16.msra.mxu0 0
      %1747 = vmatprep.mubr.bf16.mxu0 0
      %1748 = vmatmul.mubr.bf16.gmra.mrb[0].mxu0 %v1689
      %v1749 = vpop.f32.mrb[0].mxu0
      %v1750 = vadd.f32 0.0, %v1749
      %v1751 = vpop.f32.mrb[0].mxu0
      %v1752 = vpop.f32.mrb[0].mxu0
      %v1753 = vadd.f32 0.0, %v1752
      %v1754 = vpop.f32.mrb[0].mxu0
      %1755 = vmatprep.mubr.bf16.mxu0 0
      %1756 = vmatmul.mubr.bf16.gmra.mrb[0].mxu0 %v1692
      %v1757 = vpop.f32.mrb[0].mxu0
      %v1758 = vadd.f32 0.0, %v1757
      %v1759 = vpop.f32.mrb[0].mxu0
      %v1760 = vpop.f32.mrb[0].mxu0
      %v1761 = vadd.f32 0.0, %v1760
      %v1762 = vpop.f32.mrb[0].mxu0
      %1763 = vmatprep.mubr.bf16.mxu0 0
      %1764 = vmatmul.mubr.bf16.gmra.mrb[0].mxu0 %v1695
      %v1765 = vpop.f32.mrb[0].mxu0
      %v1766 = vadd.f32 0.0, %v1765
      %v1767 = vpop.f32.mrb[0].mxu0
      %v1768 = vpop.f32.mrb[0].mxu0
      %v1769 = vadd.f32 0.0, %v1768
      %v1770 = vpop.f32.mrb[0].mxu0
      %1771 = vmatprep.mubr.bf16.mxu0 0
      %1772 = vmatmul.mubr.bf16.gmra.mrb[0].mxu0 %v1698
      %v1773 = vpop.f32.mrb[0].mxu0
      %v1774 = vadd.f32 0.0, %v1773
      %v1775 = vpop.f32.mrb[0].mxu0
      %v1776 = vpop.f32.mrb[0].mxu0
      %v1777 = vadd.f32 0.0, %v1776
      %v1778 = vpop.f32.mrb[0].mxu0
      %1779 = vmatprep.mubr.bf16.mxu0 0
      %1780 = vmatmul.mubr.bf16.gmra.mrb[0].mxu0 %v1701
      %v1781 = vpop.f32.mrb[0].mxu0
      %v1782 = vadd.f32 0.0, %v1781
      %v1783 = vpop.f32.mrb[0].mxu0
      %v1784 = vpop.f32.mrb[0].mxu0
      %v1785 = vadd.f32 0.0, %v1784
      %v1786 = vpop.f32.mrb[0].mxu0
      %1787 = vmatprep.mubr.bf16.mxu0 0
      %1788 = vmatmul.mubr.bf16.gmra.mrb[0].mxu0 %v1704
      %v1789 = vpop.f32.mrb[0].mxu0
      %v1790 = vadd.f32 0.0, %v1789
      %v1791 = vpop.f32.mrb[0].mxu0
      %v1792 = vpop.f32.mrb[0].mxu0
      %v1793 = vadd.f32 0.0, %v1792
      %v1794 = vpop.f32.mrb[0].mxu0
      %1795 = vmatprep.mubr.bf16.mxu0 0
      %1796 = vmatmul.mubr.bf16.gmra.mrb[0].mxu0 %v1707
      %v1797 = vpop.f32.mrb[0].mxu0
      %v1798 = vadd.f32 0.0, %v1797
      %v1799 = vpop.f32.mrb[0].mxu0
      %v1800 = vpop.f32.mrb[0].mxu0
      %v1801 = vadd.f32 0.0, %v1800
      %v1802 = vpop.f32.mrb[0].mxu0
      %1803 = vmatprep.mubr.bf16.mxu0 0
      %1804 = vmatmul.mubr.bf16.gmra.mrb[0].mxu0 %v1710
      %v1805 = vpop.f32.mrb[0].mxu0
      %v1806 = vadd.f32 0.0, %v1805
      %v1807 = vpop.f32.mrb[0].mxu0
      %v1808 = vpop.f32.mrb[0].mxu0
      %v1809 = vadd.f32 0.0, %v1808
      %v1810 = vpop.f32.mrb[0].mxu0
      %1811 = vdwg.mxu0
      %v1812 = vadd.f32 %v1558, %v1750
      %v1813 = vadd.f32 %v1559, %v1753
      %v1814 = vadd.f32 %v1560, %v1758
      %v1815 = vadd.f32 %v1561, %v1761
      %v1816 = vadd.f32 %v1562, %v1766
      %v1817 = vadd.f32 %v1563, %v1769
      %v1818 = vadd.f32 %v1564, %v1774
      %v1819 = vadd.f32 %v1565, %v1777
      %v1820 = vadd.f32 %v1566, %v1782
      %v1821 = vadd.f32 %v1567, %v1785
      %v1822 = vadd.f32 %v1568, %v1790
      %v1823 = vadd.f32 %v1569, %v1793
      %v1824 = vadd.f32 %v1570, %v1798
      %v1825 = vadd.f32 %v1571, %v1801
      %v1826 = vadd.f32 %v1572, %v1806
      %v1827 = vadd.f32 %v1573, %v1809
      %s1828 = scalar_lea.vmem %s197, 24
      %v1829 = vld [vmem:[%s1828] sm:$0xf]
      %v1830 = vld [vmem:[%s1828 + $0x4] sm:$0xf]
      %v1831 = vld [vmem:[%s1828 + $0xc] sm:$0xf]
      %v1832 = vld [vmem:[%s1828 + $0x10] sm:$0xf]
      %v1833 = vld [vmem:[%s1828 + $0x18] sm:$0xf]
      %v1834 = vld [vmem:[%s1828 + $0x1c] sm:$0xf]
      %v1835 = vld [vmem:[%s1828 + $0x24] sm:$0xf]
      %v1836 = vld [vmem:[%s1828 + $0x28] sm:$0xf]
      %v1837 = vld [vmem:[%s1828 + $0x30] sm:$0xf]
      %v1838 = vld [vmem:[%s1828 + $0x34] sm:$0xf]
      %v1839 = vld [vmem:[%s1828 + $0x3c] sm:$0xf]
      %v1840 = vld [vmem:[%s1828 + $0x40] sm:$0xf]
      %v1841 = vld [vmem:[%s1828 + $0x48] sm:$0xf]
      %v1842 = vld [vmem:[%s1828 + $0x4c] sm:$0xf]
      %v1843 = vld [vmem:[%s1828 + $0x54] sm:$0xf]
      %v1844 = vld [vmem:[%s1828 + $0x58] sm:$0xf]
      %s1845 = scalar_lea.vmem %s1, 24
      %v1846 = vld [vmem:[%s1845] sm:$0xf]
      %v1863 = vunpack.c.l.b16 %v1829
      %v1864 = vunpack.c.l.b16 %v1830
      %v1865 = vunpack.c.l.b16 %v1831
      %v1866 = vunpack.c.l.b16 %v1832
      %v1867 = vunpack.c.l.b16 %v1833
      %v1868 = vunpack.c.l.b16 %v1834
      %v1869 = vunpack.c.l.b16 %v1835
      %v1870 = vunpack.c.l.b16 %v1836
      %v1871 = vunpack.c.l.b16 %v1837
      %v1872 = vunpack.c.l.b16 %v1838
      %v1873 = vunpack.c.l.b16 %v1839
      %v1874 = vunpack.c.l.b16 %v1840
      %v1875 = vunpack.c.l.b16 %v1841
      %v1876 = vunpack.c.l.b16 %v1842
      %v1877 = vunpack.c.l.b16 %v1843
      %v1878 = vunpack.c.l.b16 %v1844
      %v1879 = vpack.c.b16 %v1864, %v1863
      %v1880 = vpack.c.b16 %v1866, %v1865
      %v1881 = vpack.c.b16 %v1868, %v1867
      %v1882 = vpack.c.b16 %v1870, %v1869
      %v1883 = vpack.c.b16 %v1872, %v1871
      %v1884 = vpack.c.b16 %v1874, %v1873
      %v1885 = vpack.c.b16 %v1876, %v1875
      %v1886 = vpack.c.b16 %v1878, %v1877
      %v1888 = vsel %vm454, %v1879, 0
      %v1891 = vsel %vm454, %v1880, 0
      %v1894 = vsel %vm454, %v1881, 0
      %v1897 = vsel %vm454, %v1882, 0
      %v1900 = vsel %vm454, %v1883, 0
      %v1903 = vsel %vm454, %v1884, 0
      %v1906 = vsel %vm454, %v1885, 0
      %v1909 = vsel %vm454, %v1886, 0
      %v1912 = vsel %vm479, %v1846, 0
      %1914 = vmatprep.subr.bf16.mxu0 0
      %1915 = vmatpush1.bf16.msra.mxu0 %v1912
      %1916 = vmatprep.subr.bf16.mxu0 0
      %1917 = vmatpush1.bf16.msra.mxu0 0
      %1918 = vmatprep.subr.bf16.mxu0 0
      %1919 = vmatpush1.bf16.msra.mxu0 0
      %1920 = vmatprep.subr.bf16.mxu0 0
      %1921 = vmatpush1.bf16.msra.mxu0 0
      %1922 = vmatprep.subr.bf16.mxu0 0
      %1923 = vmatpush1.bf16.msra.mxu0 0
      %1924 = vmatprep.subr.bf16.mxu0 0
      %1925 = vmatpush1.bf16.msra.mxu0 0
      %1926 = vmatprep.subr.bf16.mxu0 0
      %1927 = vmatpush1.bf16.msra.mxu0 0
      %1928 = vmatprep.subr.bf16.mxu0 0
      %1929 = vmatpush1.bf16.msra.mxu0 0
      %1930 = vmatprep.subr.bf16.mxu0 0
      %1931 = vmatpush1.bf16.msra.mxu0 0
      %1932 = vmatprep.subr.bf16.mxu0 0
      %1933 = vmatpush1.bf16.msra.mxu0 0
      %1934 = vmatprep.subr.bf16.mxu0 0
      %1935 = vmatpush1.bf16.msra.mxu0 0
      %1936 = vmatprep.subr.bf16.mxu0 0
      %1937 = vmatpush1.bf16.msra.mxu0 0
      %1938 = vmatprep.subr.bf16.mxu0 0
      %1939 = vmatpush1.bf16.msra.mxu0 0
      %1940 = vmatprep.subr.bf16.mxu0 0
      %1941 = vmatpush1.bf16.msra.mxu0 0
      %1942 = vmatprep.subr.bf16.mxu0 0
      %1943 = vmatpush1.bf16.msra.mxu0 0
      %1944 = vmatprep.subr.bf16.mxu0 0
      %1945 = vmatpush1.bf16.msra.mxu0 0
      %1946 = vmatprep.mubr.bf16.mxu0 0
      %1947 = vmatmul.mubr.bf16.gmra.mrb[0].mxu0 %v1888
      %v1948 = vpop.f32.mrb[0].mxu0
      %v1949 = vadd.f32 0.0, %v1948
      %v1950 = vpop.f32.mrb[0].mxu0
      %v1951 = vpop.f32.mrb[0].mxu0
      %v1952 = vadd.f32 0.0, %v1951
      %v1953 = vpop.f32.mrb[0].mxu0
      %1954 = vmatprep.mubr.bf16.mxu0 0
      %1955 = vmatmul.mubr.bf16.gmra.mrb[0].mxu0 %v1891
      %v1956 = vpop.f32.mrb[0].mxu0
      %v1957 = vadd.f32 0.0, %v1956
      %v1958 = vpop.f32.mrb[0].mxu0
      %v1959 = vpop.f32.mrb[0].mxu0
      %v1960 = vadd.f32 0.0, %v1959
      %v1961 = vpop.f32.mrb[0].mxu0
      %1962 = vmatprep.mubr.bf16.mxu0 0
      %1963 = vmatmul.mubr.bf16.gmra.mrb[0].mxu0 %v1894
      %v1964 = vpop.f32.mrb[0].mxu0
      %v1965 = vadd.f32 0.0, %v1964
      %v1966 = vpop.f32.mrb[0].mxu0
      %v1967 = vpop.f32.mrb[0].mxu0
      %v1968 = vadd.f32 0.0, %v1967
      %v1969 = vpop.f32.mrb[0].mxu0
      %1970 = vmatprep.mubr.bf16.mxu0 0
      %1971 = vmatmul.mubr.bf16.gmra.mrb[0].mxu0 %v1897
      %v1972 = vpop.f32.mrb[0].mxu0
      %v1973 = vadd.f32 0.0, %v1972
      %v1974 = vpop.f32.mrb[0].mxu0
      %v1975 = vpop.f32.mrb[0].mxu0
      %v1976 = vadd.f32 0.0, %v1975
      %v1977 = vpop.f32.mrb[0].mxu0
      %1978 = vmatprep.mubr.bf16.mxu0 0
      %1979 = vmatmul.mubr.bf16.gmra.mrb[0].mxu0 %v1900
      %v1980 = vpop.f32.mrb[0].mxu0
      %v1981 = vadd.f32 0.0, %v1980
      %v1982 = vpop.f32.mrb[0].mxu0
      %v1983 = vpop.f32.mrb[0].mxu0
      %v1984 = vadd.f32 0.0, %v1983
      %v1985 = vpop.f32.mrb[0].mxu0
      %1986 = vmatprep.mubr.bf16.mxu0 0
      %1987 = vmatmul.mubr.bf16.gmra.mrb[0].mxu0 %v1903
      %v1988 = vpop.f32.mrb[0].mxu0
      %v1989 = vadd.f32 0.0, %v1988
      %v1990 = vpop.f32.mrb[0].mxu0
      %v1991 = vpop.f32.mrb[0].mxu0
      %v1992 = vadd.f32 0.0, %v1991
      %v1993 = vpop.f32.mrb[0].mxu0
      %1994 = vmatprep.mubr.bf16.mxu0 0
      %1995 = vmatmul.mubr.bf16.gmra.mrb[0].mxu0 %v1906
      %v1996 = vpop.f32.mrb[0].mxu0
      %v1997 = vadd.f32 0.0, %v1996
      %v1998 = vpop.f32.mrb[0].mxu0
      %v1999 = vpop.f32.mrb[0].mxu0
      %v2000 = vadd.f32 0.0, %v1999
      %v2001 = vpop.f32.mrb[0].mxu0
      %2002 = vmatprep.mubr.bf16.mxu0 0
      %2003 = vmatmul.mubr.bf16.gmra.mrb[0].mxu0 %v1909
      %v2004 = vpop.f32.mrb[0].mxu0
      %v2005 = vadd.f32 0.0, %v2004
      %v2006 = vpop.f32.mrb[0].mxu0
      %v2007 = vpop.f32.mrb[0].mxu0
      %v2008 = vadd.f32 0.0, %v2007
      %v2009 = vpop.f32.mrb[0].mxu0
      %2010 = vdwg.mxu0
      %v2011 = vadd.f32 %v1812, %v1949
      %v2012 = vadd.f32 %v1813, %v1952
      %v2013 = vadd.f32 %v1814, %v1957
      %v2014 = vadd.f32 %v1815, %v1960
      %v2015 = vadd.f32 %v1816, %v1965
      %v2016 = vadd.f32 %v1817, %v1968
      %v2017 = vadd.f32 %v1818, %v1973
      %v2018 = vadd.f32 %v1819, %v1976
      %v2019 = vadd.f32 %v1820, %v1981
      %v2020 = vadd.f32 %v1821, %v1984
      %v2021 = vadd.f32 %v1822, %v1989
      %v2022 = vadd.f32 %v1823, %v1992
      %v2023 = vadd.f32 %v1824, %v1997
      %v2024 = vadd.f32 %v1825, %v2000
      %v2025 = vadd.f32 %v1826, %v2005
      %v2026 = vadd.f32 %v1827, %v2008
      %v2027 = vld [vmem:[%s1828] sm:$0xf]
      %v2028 = vld [vmem:[%s1828 + $0x4] sm:$0xf]
      %v2029 = vld [vmem:[%s1828 + $0x8] sm:$0x1]
      %v2030 = vld [vmem:[%s1828 + $0xc] sm:$0xf]
      %v2031 = vld [vmem:[%s1828 + $0x10] sm:$0xf]
      %v2032 = vld [vmem:[%s1828 + $0x14] sm:$0x1]
      %v2033 = vld [vmem:[%s1828 + $0x18] sm:$0xf]
      %v2034 = vld [vmem:[%s1828 + $0x1c] sm:$0xf]
      %v2035 = vld [vmem:[%s1828 + $0x20] sm:$0x1]
      %v2036 = vld [vmem:[%s1828 + $0x24] sm:$0xf]
      %v2037 = vld [vmem:[%s1828 + $0x28] sm:$0xf]
      %v2038 = vld [vmem:[%s1828 + $0x2c] sm:$0x1]
      %v2039 = vld [vmem:[%s1828 + $0x30] sm:$0xf]
      %v2040 = vld [vmem:[%s1828 + $0x34] sm:$0xf]
      %v2041 = vld [vmem:[%s1828 + $0x38] sm:$0x1]
      %v2042 = vld [vmem:[%s1828 + $0x3c] sm:$0xf]
      %v2043 = vld [vmem:[%s1828 + $0x40] sm:$0xf]
      %v2044 = vld [vmem:[%s1828 + $0x44] sm:$0x1]
      %v2045 = vld [vmem:[%s1828 + $0x48] sm:$0xf]
      %v2046 = vld [vmem:[%s1828 + $0x4c] sm:$0xf]
      %v2047 = vld [vmem:[%s1828 + $0x50] sm:$0x1]
      %v2048 = vld [vmem:[%s1828 + $0x54] sm:$0xf]
      %v2049 = vld [vmem:[%s1828 + $0x58] sm:$0xf]
      %v2050 = vld [vmem:[%s1828 + $0x5c] sm:$0x1]
      %s2051 = scalar_lea.vmem %s1, 28
      %v2052 = vld [vmem:[%s2051] sm:$0xf]
      %v2054 = vshrl.u32 %v2027, 16
      %v2056 = vrot.slane %v2054, 4
      %v2057 = vshll.u32 %v2027, 16
      %v2059 = vrot.slane %v2057, 5
      %v2060 = vor.u32 %v2056, %v2059
      %v2061 = vrot.slane %v2060, 4
      %v2063 = vshll.u32 %v2028, 16
      %v2065 = vrot.slane %v2063, 5
      %v2066 = vsel %vm237, %v2061, %v2065
      %v2067 = vshrl.u32 %v2028, 16
      %v2069 = vrot.slane %v2067, 4
      %v2070 = vor.u32 %v2069, %v2065
      %v2071 = vrot.slane %v2070, 4
      %v2073 = vshll.u32 %v2029, 16
      %v2075 = vrot.slane %v2073, 5
      %v2076 = vsel %vm237, %v2071, %v2075
      %v2078 = vshrl.u32 %v2030, 16
      %v2080 = vrot.slane %v2078, 4
      %v2081 = vshll.u32 %v2030, 16
      %v2083 = vrot.slane %v2081, 5
      %v2084 = vor.u32 %v2080, %v2083
      %v2085 = vrot.slane %v2084, 4
      %v2087 = vshll.u32 %v2031, 16
      %v2089 = vrot.slane %v2087, 5
      %v2090 = vsel %vm237, %v2085, %v2089
      %v2091 = vshrl.u32 %v2031, 16
      %v2093 = vrot.slane %v2091, 4
      %v2094 = vor.u32 %v2093, %v2089
      %v2095 = vrot.slane %v2094, 4
      %v2097 = vshll.u32 %v2032, 16
      %v2099 = vrot.slane %v2097, 5
      %v2100 = vsel %vm237, %v2095, %v2099
      %v2102 = vshrl.u32 %v2033, 16
      %v2104 = vrot.slane %v2102, 4
      %v2105 = vshll.u32 %v2033, 16
      %v2107 = vrot.slane %v2105, 5
      %v2108 = vor.u32 %v2104, %v2107
      %v2109 = vrot.slane %v2108, 4
      %v2111 = vshll.u32 %v2034, 16
      %v2113 = vrot.slane %v2111, 5
      %v2114 = vsel %vm237, %v2109, %v2113
      %v2115 = vshrl.u32 %v2034, 16
      %v2117 = vrot.slane %v2115, 4
      %v2118 = vor.u32 %v2117, %v2113
      %v2119 = vrot.slane %v2118, 4
      %v2121 = vshll.u32 %v2035, 16
      %v2123 = vrot.slane %v2121, 5
      %v2124 = vsel %vm237, %v2119, %v2123
      %v2126 = vshrl.u32 %v2036, 16
      %v2128 = vrot.slane %v2126, 4
      %v2129 = vshll.u32 %v2036, 16
      %v2131 = vrot.slane %v2129, 5
      %v2132 = vor.u32 %v2128, %v2131
      %v2133 = vrot.slane %v2132, 4
      %v2135 = vshll.u32 %v2037, 16
      %v2137 = vrot.slane %v2135, 5
      %v2138 = vsel %vm237, %v2133, %v2137
      %v2139 = vshrl.u32 %v2037, 16
      %v2141 = vrot.slane %v2139, 4
      %v2142 = vor.u32 %v2141, %v2137
      %v2143 = vrot.slane %v2142, 4
      %v2145 = vshll.u32 %v2038, 16
      %v2147 = vrot.slane %v2145, 5
      %v2148 = vsel %vm237, %v2143, %v2147
      %v2150 = vshrl.u32 %v2039, 16
      %v2152 = vrot.slane %v2150, 4
      %v2153 = vshll.u32 %v2039, 16
      %v2155 = vrot.slane %v2153, 5
      %v2156 = vor.u32 %v2152, %v2155
      %v2157 = vrot.slane %v2156, 4
      %v2159 = vshll.u32 %v2040, 16
      %v2161 = vrot.slane %v2159, 5
      %v2162 = vsel %vm237, %v2157, %v2161
      %v2163 = vshrl.u32 %v2040, 16
      %v2165 = vrot.slane %v2163, 4
      %v2166 = vor.u32 %v2165, %v2161
      %v2167 = vrot.slane %v2166, 4
      %v2169 = vshll.u32 %v2041, 16
      %v2171 = vrot.slane %v2169, 5
      %v2172 = vsel %vm237, %v2167, %v2171
      %v2174 = vshrl.u32 %v2042, 16
      %v2176 = vrot.slane %v2174, 4
      %v2177 = vshll.u32 %v2042, 16
      %v2179 = vrot.slane %v2177, 5
      %v2180 = vor.u32 %v2176, %v2179
      %v2181 = vrot.slane %v2180, 4
      %v2183 = vshll.u32 %v2043, 16
      %v2185 = vrot.slane %v2183, 5
      %v2186 = vsel %vm237, %v2181, %v2185
      %v2187 = vshrl.u32 %v2043, 16
      %v2189 = vrot.slane %v2187, 4
      %v2190 = vor.u32 %v2189, %v2185
      %v2191 = vrot.slane %v2190, 4
      %v2193 = vshll.u32 %v2044, 16
      %v2195 = vrot.slane %v2193, 5
      %v2196 = vsel %vm237, %v2191, %v2195
      %v2198 = vshrl.u32 %v2045, 16
      %v2200 = vrot.slane %v2198, 4
      %v2201 = vshll.u32 %v2045, 16
      %v2203 = vrot.slane %v2201, 5
      %v2204 = vor.u32 %v2200, %v2203
      %v2205 = vrot.slane %v2204, 4
      %v2207 = vshll.u32 %v2046, 16
      %v2209 = vrot.slane %v2207, 5
      %v2210 = vsel %vm237, %v2205, %v2209
      %v2211 = vshrl.u32 %v2046, 16
      %v2213 = vrot.slane %v2211, 4
      %v2214 = vor.u32 %v2213, %v2209
      %v2215 = vrot.slane %v2214, 4
      %v2217 = vshll.u32 %v2047, 16
      %v2219 = vrot.slane %v2217, 5
      %v2220 = vsel %vm237, %v2215, %v2219
      %v2222 = vshrl.u32 %v2048, 16
      %v2224 = vrot.slane %v2222, 4
      %v2225 = vshll.u32 %v2048, 16
      %v2227 = vrot.slane %v2225, 5
      %v2228 = vor.u32 %v2224, %v2227
      %v2229 = vrot.slane %v2228, 4
      %v2231 = vshll.u32 %v2049, 16
      %v2233 = vrot.slane %v2231, 5
      %v2234 = vsel %vm237, %v2229, %v2233
      %v2235 = vshrl.u32 %v2049, 16
      %v2237 = vrot.slane %v2235, 4
      %v2238 = vor.u32 %v2237, %v2233
      %v2239 = vrot.slane %v2238, 4
      %v2241 = vshll.u32 %v2050, 16
      %v2243 = vrot.slane %v2241, 5
      %v2244 = vsel %vm237, %v2239, %v2243
      %v2245 = vunpack.c.l.b16 %v2066
      %v2246 = vunpack.c.l.b16 %v2076
      %v2247 = vunpack.c.l.b16 %v2090
      %v2248 = vunpack.c.l.b16 %v2100
      %v2249 = vunpack.c.l.b16 %v2114
      %v2250 = vunpack.c.l.b16 %v2124
      %v2251 = vunpack.c.l.b16 %v2138
      %v2252 = vunpack.c.l.b16 %v2148
      %v2253 = vunpack.c.l.b16 %v2162
      %v2254 = vunpack.c.l.b16 %v2172
      %v2255 = vunpack.c.l.b16 %v2186
      %v2256 = vunpack.c.l.b16 %v2196
      %v2257 = vunpack.c.l.b16 %v2210
      %v2258 = vunpack.c.l.b16 %v2220
      %v2259 = vunpack.c.l.b16 %v2234
      %v2260 = vunpack.c.l.b16 %v2244
      %v2261 = vpack.c.b16 %v2246, %v2245
      %v2262 = vpack.c.b16 %v2248, %v2247
      %v2263 = vpack.c.b16 %v2250, %v2249
      %v2264 = vpack.c.b16 %v2252, %v2251
      %v2265 = vpack.c.b16 %v2254, %v2253
      %v2266 = vpack.c.b16 %v2256, %v2255
      %v2267 = vpack.c.b16 %v2258, %v2257
      %v2268 = vpack.c.b16 %v2260, %v2259
      %v2270 = vsel %vm454, %v2261, 0
      %v2273 = vsel %vm454, %v2262, 0
      %v2276 = vsel %vm454, %v2263, 0
      %v2279 = vsel %vm454, %v2264, 0
      %v2282 = vsel %vm454, %v2265, 0
      %v2285 = vsel %vm454, %v2266, 0
      %v2288 = vsel %vm454, %v2267, 0
      %v2291 = vsel %vm454, %v2268, 0
      %v2294 = vsel %vm479, %v2052, 0
      %2296 = vmatprep.subr.bf16.mxu0 0
      %2297 = vmatpush1.bf16.msra.mxu0 %v2294
      %2298 = vmatprep.subr.bf16.mxu0 0
      %2299 = vmatpush1.bf16.msra.mxu0 0
      %2300 = vmatprep.subr.bf16.mxu0 0
      %2301 = vmatpush1.bf16.msra.mxu0 0
      %2302 = vmatprep.subr.bf16.mxu0 0
      %2303 = vmatpush1.bf16.msra.mxu0 0
      %2304 = vmatprep.subr.bf16.mxu0 0
      %2305 = vmatpush1.bf16.msra.mxu0 0
      %2306 = vmatprep.subr.bf16.mxu0 0
      %2307 = vmatpush1.bf16.msra.mxu0 0
      %2308 = vmatprep.subr.bf16.mxu0 0
      %2309 = vmatpush1.bf16.msra.mxu0 0
      %2310 = vmatprep.subr.bf16.mxu0 0
      %2311 = vmatpush1.bf16.msra.mxu0 0
      %2312 = vmatprep.subr.bf16.mxu0 0
      %2313 = vmatpush1.bf16.msra.mxu0 0
      %2314 = vmatprep.subr.bf16.mxu0 0
      %2315 = vmatpush1.bf16.msra.mxu0 0
      %2316 = vmatprep.subr.bf16.mxu0 0
      %2317 = vmatpush1.bf16.msra.mxu0 0
      %2318 = vmatprep.subr.bf16.mxu0 0
      %2319 = vmatpush1.bf16.msra.mxu0 0
      %2320 = vmatprep.subr.bf16.mxu0 0
      %2321 = vmatpush1.bf16.msra.mxu0 0
      %2322 = vmatprep.subr.bf16.mxu0 0
      %2323 = vmatpush1.bf16.msra.mxu0 0
      %2324 = vmatprep.subr.bf16.mxu0 0
      %2325 = vmatpush1.bf16.msra.mxu0 0
      %2326 = vmatprep.subr.bf16.mxu0 0
      %2327 = vmatpush1.bf16.msra.mxu0 0
      %2328 = vmatprep.mubr.bf16.mxu0 0
      %2329 = vmatmul.mubr.bf16.gmra.mrb[0].mxu0 %v2270
      %v2330 = vpop.f32.mrb[0].mxu0
      %v2331 = vadd.f32 0.0, %v2330
      %v2332 = vpop.f32.mrb[0].mxu0
      %v2333 = vpop.f32.mrb[0].mxu0
      %v2334 = vadd.f32 0.0, %v2333
      %v2335 = vpop.f32.mrb[0].mxu0
      %2336 = vmatprep.mubr.bf16.mxu0 0
      %2337 = vmatmul.mubr.bf16.gmra.mrb[0].mxu0 %v2273
      %v2338 = vpop.f32.mrb[0].mxu0
      %v2339 = vadd.f32 0.0, %v2338
      %v2340 = vpop.f32.mrb[0].mxu0
      %v2341 = vpop.f32.mrb[0].mxu0
      %v2342 = vadd.f32 0.0, %v2341
      %v2343 = vpop.f32.mrb[0].mxu0
      %2344 = vmatprep.mubr.bf16.mxu0 0
      %2345 = vmatmul.mubr.bf16.gmra.mrb[0].mxu0 %v2276
      %v2346 = vpop.f32.mrb[0].mxu0
      %v2347 = vadd.f32 0.0, %v2346
      %v2348 = vpop.f32.mrb[0].mxu0
      %v2349 = vpop.f32.mrb[0].mxu0
      %v2350 = vadd.f32 0.0, %v2349
      %v2351 = vpop.f32.mrb[0].mxu0
      %2352 = vmatprep.mubr.bf16.mxu0 0
      %2353 = vmatmul.mubr.bf16.gmra.mrb[0].mxu0 %v2279
      %v2354 = vpop.f32.mrb[0].mxu0
      %v2355 = vadd.f32 0.0, %v2354
      %v2356 = vpop.f32.mrb[0].mxu0
      %v2357 = vpop.f32.mrb[0].mxu0
      %v2358 = vadd.f32 0.0, %v2357
      %v2359 = vpop.f32.mrb[0].mxu0
      %2360 = vmatprep.mubr.bf16.mxu0 0
      %2361 = vmatmul.mubr.bf16.gmra.mrb[0].mxu0 %v2282
      %v2362 = vpop.f32.mrb[0].mxu0
      %v2363 = vadd.f32 0.0, %v2362
      %v2364 = vpop.f32.mrb[0].mxu0
      %v2365 = vpop.f32.mrb[0].mxu0
      %v2366 = vadd.f32 0.0, %v2365
      %v2367 = vpop.f32.mrb[0].mxu0
      %2368 = vmatprep.mubr.bf16.mxu0 0
      %2369 = vmatmul.mubr.bf16.gmra.mrb[0].mxu0 %v2285
      %v2370 = vpop.f32.mrb[0].mxu0
      %v2371 = vadd.f32 0.0, %v2370
      %v2372 = vpop.f32.mrb[0].mxu0
      %v2373 = vpop.f32.mrb[0].mxu0
      %v2374 = vadd.f32 0.0, %v2373
      %v2375 = vpop.f32.mrb[0].mxu0
      %2376 = vmatprep.mubr.bf16.mxu0 0
      %2377 = vmatmul.mubr.bf16.gmra.mrb[0].mxu0 %v2288
      %v2378 = vpop.f32.mrb[0].mxu0
      %v2379 = vadd.f32 0.0, %v2378
      %v2380 = vpop.f32.mrb[0].mxu0
      %v2381 = vpop.f32.mrb[0].mxu0
      %v2382 = vadd.f32 0.0, %v2381
      %v2383 = vpop.f32.mrb[0].mxu0
      %2384 = vmatprep.mubr.bf16.mxu0 0
      %2385 = vmatmul.mubr.bf16.gmra.mrb[0].mxu0 %v2291
      %v2386 = vpop.f32.mrb[0].mxu0
      %v2387 = vadd.f32 0.0, %v2386
      %v2388 = vpop.f32.mrb[0].mxu0
      %v2389 = vpop.f32.mrb[0].mxu0
      %v2390 = vadd.f32 0.0, %v2389
      %v2391 = vpop.f32.mrb[0].mxu0
      %2392 = vdwg.mxu0
      %v2393 = vadd.f32 %v2011, %v2331
      %v2394 = vadd.f32 %v2012, %v2334
      %v2395 = vadd.f32 %v2013, %v2339
      %v2396 = vadd.f32 %v2014, %v2342
      %v2397 = vadd.f32 %v2015, %v2347
      %v2398 = vadd.f32 %v2016, %v2350
      %v2399 = vadd.f32 %v2017, %v2355
      %v2400 = vadd.f32 %v2018, %v2358
      %v2401 = vadd.f32 %v2019, %v2363
      %v2402 = vadd.f32 %v2020, %v2366
      %v2403 = vadd.f32 %v2021, %v2371
      %v2404 = vadd.f32 %v2022, %v2374
      %v2405 = vadd.f32 %v2023, %v2379
      %v2406 = vadd.f32 %v2024, %v2382
      %v2407 = vadd.f32 %v2025, %v2387
      %v2408 = vadd.f32 %v2026, %v2390
      %v2409 = vld [vmem:[%s1828] sm:$0xe]
      %v2410 = vld [vmem:[%s1828 + $0xc] sm:$0xe]
      %v2411 = vld [vmem:[%s1828 + $0x18] sm:$0xe]
      %v2412 = vld [vmem:[%s1828 + $0x24] sm:$0xe]
      %v2413 = vld [vmem:[%s1828 + $0x30] sm:$0xe]
      %v2414 = vld [vmem:[%s1828 + $0x3c] sm:$0xe]
      %v2415 = vld [vmem:[%s1828 + $0x48] sm:$0xe]
      %v2416 = vld [vmem:[%s1828 + $0x54] sm:$0xe]
      %s2417 = scalar_lea.vmem %s1, 32
      %v2418 = vld [vmem:[%s2417] sm:$0xf]
      %v2443 = vrot.slane %v2409, 5
      %v2444 = vrot.slane %v2443, 4
      %v2445 = vrot.slane %v2028, 5
      %v2446 = vsel %vm772, %v2444, %v2445
      %v2447 = vrot.slane %v2445, 4
      %v2448 = vrot.slane %v2029, 5
      %v2449 = vsel %vm772, %v2447, %v2448
      %v2450 = vrot.slane %v2410, 5
      %v2451 = vrot.slane %v2450, 4
      %v2452 = vrot.slane %v2031, 5
      %v2453 = vsel %vm772, %v2451, %v2452
      %v2454 = vrot.slane %v2452, 4
      %v2455 = vrot.slane %v2032, 5
      %v2456 = vsel %vm772, %v2454, %v2455
      %v2457 = vrot.slane %v2411, 5
      %v2458 = vrot.slane %v2457, 4
      %v2459 = vrot.slane %v2034, 5
      %v2460 = vsel %vm772, %v2458, %v2459
      %v2461 = vrot.slane %v2459, 4
      %v2462 = vrot.slane %v2035, 5
      %v2463 = vsel %vm772, %v2461, %v2462
      %v2464 = vrot.slane %v2412, 5
      %v2465 = vrot.slane %v2464, 4
      %v2466 = vrot.slane %v2037, 5
      %v2467 = vsel %vm772, %v2465, %v2466
      %v2468 = vrot.slane %v2466, 4
      %v2469 = vrot.slane %v2038, 5
      %v2470 = vsel %vm772, %v2468, %v2469
      %v2471 = vrot.slane %v2413, 5
      %v2472 = vrot.slane %v2471, 4
      %v2473 = vrot.slane %v2040, 5
      %v2474 = vsel %vm772, %v2472, %v2473
      %v2475 = vrot.slane %v2473, 4
      %v2476 = vrot.slane %v2041, 5
      %v2477 = vsel %vm772, %v2475, %v2476
      %v2478 = vrot.slane %v2414, 5
      %v2479 = vrot.slane %v2478, 4
      %v2480 = vrot.slane %v2043, 5
      %v2481 = vsel %vm772, %v2479, %v2480
      %v2482 = vrot.slane %v2480, 4
      %v2483 = vrot.slane %v2044, 5
      %v2484 = vsel %vm772, %v2482, %v2483
      %v2485 = vrot.slane %v2415, 5
      %v2486 = vrot.slane %v2485, 4
      %v2487 = vrot.slane %v2046, 5
      %v2488 = vsel %vm772, %v2486, %v2487
      %v2489 = vrot.slane %v2487, 4
      %v2490 = vrot.slane %v2047, 5
      %v2491 = vsel %vm772, %v2489, %v2490
      %v2492 = vrot.slane %v2416, 5
      %v2493 = vrot.slane %v2492, 4
      %v2494 = vrot.slane %v2049, 5
      %v2495 = vsel %vm772, %v2493, %v2494
      %v2496 = vrot.slane %v2494, 4
      %v2497 = vrot.slane %v2050, 5
      %v2498 = vsel %vm772, %v2496, %v2497
      %v2499 = vunpack.c.l.b16 %v2446
      %v2500 = vunpack.c.l.b16 %v2449
      %v2501 = vunpack.c.l.b16 %v2453
      %v2502 = vunpack.c.l.b16 %v2456
      %v2503 = vunpack.c.l.b16 %v2460
      %v2504 = vunpack.c.l.b16 %v2463
      %v2505 = vunpack.c.l.b16 %v2467
      %v2506 = vunpack.c.l.b16 %v2470
      %v2507 = vunpack.c.l.b16 %v2474
      %v2508 = vunpack.c.l.b16 %v2477
      %v2509 = vunpack.c.l.b16 %v2481
      %v2510 = vunpack.c.l.b16 %v2484
      %v2511 = vunpack.c.l.b16 %v2488
      %v2512 = vunpack.c.l.b16 %v2491
      %v2513 = vunpack.c.l.b16 %v2495
      %v2514 = vunpack.c.l.b16 %v2498
      %v2515 = vpack.c.b16 %v2500, %v2499
      %v2516 = vpack.c.b16 %v2502, %v2501
      %v2517 = vpack.c.b16 %v2504, %v2503
      %v2518 = vpack.c.b16 %v2506, %v2505
      %v2519 = vpack.c.b16 %v2508, %v2507
      %v2520 = vpack.c.b16 %v2510, %v2509
      %v2521 = vpack.c.b16 %v2512, %v2511
      %v2522 = vpack.c.b16 %v2514, %v2513
      %v2524 = vsel %vm454, %v2515, 0
      %v2527 = vsel %vm454, %v2516, 0
      %v2530 = vsel %vm454, %v2517, 0
      %v2533 = vsel %vm454, %v2518, 0
      %v2536 = vsel %vm454, %v2519, 0
      %v2539 = vsel %vm454, %v2520, 0
      %v2542 = vsel %vm454, %v2521, 0
      %v2545 = vsel %vm454, %v2522, 0
      %v2548 = vsel %vm479, %v2418, 0
      %2550 = vmatprep.subr.bf16.mxu0 0
      %2551 = vmatpush1.bf16.msra.mxu0 %v2548
      %2552 = vmatprep.subr.bf16.mxu0 0
      %2553 = vmatpush1.bf16.msra.mxu0 0
      %2554 = vmatprep.subr.bf16.mxu0 0
      %2555 = vmatpush1.bf16.msra.mxu0 0
      %2556 = vmatprep.subr.bf16.mxu0 0
      %2557 = vmatpush1.bf16.msra.mxu0 0
      %2558 = vmatprep.subr.bf16.mxu0 0
      %2559 = vmatpush1.bf16.msra.mxu0 0
      %2560 = vmatprep.subr.bf16.mxu0 0
      %2561 = vmatpush1.bf16.msra.mxu0 0
      %2562 = vmatprep.subr.bf16.mxu0 0
      %2563 = vmatpush1.bf16.msra.mxu0 0
      %2564 = vmatprep.subr.bf16.mxu0 0
      %2565 = vmatpush1.bf16.msra.mxu0 0
      %2566 = vmatprep.subr.bf16.mxu0 0
      %2567 = vmatpush1.bf16.msra.mxu0 0
      %2568 = vmatprep.subr.bf16.mxu0 0
      %2569 = vmatpush1.bf16.msra.mxu0 0
      %2570 = vmatprep.subr.bf16.mxu0 0
      %2571 = vmatpush1.bf16.msra.mxu0 0
      %2572 = vmatprep.subr.bf16.mxu0 0
      %2573 = vmatpush1.bf16.msra.mxu0 0
      %2574 = vmatprep.subr.bf16.mxu0 0
      %2575 = vmatpush1.bf16.msra.mxu0 0
      %2576 = vmatprep.subr.bf16.mxu0 0
      %2577 = vmatpush1.bf16.msra.mxu0 0
      %2578 = vmatprep.subr.bf16.mxu0 0
      %2579 = vmatpush1.bf16.msra.mxu0 0
      %2580 = vmatprep.subr.bf16.mxu0 0
      %2581 = vmatpush1.bf16.msra.mxu0 0
      %2582 = vmatprep.mubr.bf16.mxu0 0
      %2583 = vmatmul.mubr.bf16.gmra.mrb[0].mxu0 %v2524
      %v2584 = vpop.f32.mrb[0].mxu0
      %v2585 = vadd.f32 0.0, %v2584
      %v2586 = vpop.f32.mrb[0].mxu0
      %v2587 = vpop.f32.mrb[0].mxu0
      %v2588 = vadd.f32 0.0, %v2587
      %v2589 = vpop.f32.mrb[0].mxu0
      %2590 = vmatprep.mubr.bf16.mxu0 0
      %2591 = vmatmul.mubr.bf16.gmra.mrb[0].mxu0 %v2527
      %v2592 = vpop.f32.mrb[0].mxu0
      %v2593 = vadd.f32 0.0, %v2592
      %v2594 = vpop.f32.mrb[0].mxu0
      %v2595 = vpop.f32.mrb[0].mxu0
      %v2596 = vadd.f32 0.0, %v2595
      %v2597 = vpop.f32.mrb[0].mxu0
      %2598 = vmatprep.mubr.bf16.mxu0 0
      %2599 = vmatmul.mubr.bf16.gmra.mrb[0].mxu0 %v2530
      %v2600 = vpop.f32.mrb[0].mxu0
      %v2601 = vadd.f32 0.0, %v2600
      %v2602 = vpop.f32.mrb[0].mxu0
      %v2603 = vpop.f32.mrb[0].mxu0
      %v2604 = vadd.f32 0.0, %v2603
      %v2605 = vpop.f32.mrb[0].mxu0
      %2606 = vmatprep.mubr.bf16.mxu0 0
      %2607 = vmatmul.mubr.bf16.gmra.mrb[0].mxu0 %v2533
      %v2608 = vpop.f32.mrb[0].mxu0
      %v2609 = vadd.f32 0.0, %v2608
      %v2610 = vpop.f32.mrb[0].mxu0
      %v2611 = vpop.f32.mrb[0].mxu0
      %v2612 = vadd.f32 0.0, %v2611
      %v2613 = vpop.f32.mrb[0].mxu0
      %2614 = vmatprep.mubr.bf16.mxu0 0
      %2615 = vmatmul.mubr.bf16.gmra.mrb[0].mxu0 %v2536
      %v2616 = vpop.f32.mrb[0].mxu0
      %v2617 = vadd.f32 0.0, %v2616
      %v2618 = vpop.f32.mrb[0].mxu0
      %v2619 = vpop.f32.mrb[0].mxu0
      %v2620 = vadd.f32 0.0, %v2619
      %v2621 = vpop.f32.mrb[0].mxu0
      %2622 = vmatprep.mubr.bf16.mxu0 0
      %2623 = vmatmul.mubr.bf16.gmra.mrb[0].mxu0 %v2539
      %v2624 = vpop.f32.mrb[0].mxu0
      %v2625 = vadd.f32 0.0, %v2624
      %v2626 = vpop.f32.mrb[0].mxu0
      %v2627 = vpop.f32.mrb[0].mxu0
      %v2628 = vadd.f32 0.0, %v2627
      %v2629 = vpop.f32.mrb[0].mxu0
      %2630 = vmatprep.mubr.bf16.mxu0 0
      %2631 = vmatmul.mubr.bf16.gmra.mrb[0].mxu0 %v2542
      %v2632 = vpop.f32.mrb[0].mxu0
      %v2633 = vadd.f32 0.0, %v2632
      %v2634 = vpop.f32.mrb[0].mxu0
      %v2635 = vpop.f32.mrb[0].mxu0
      %v2636 = vadd.f32 0.0, %v2635
      %v2637 = vpop.f32.mrb[0].mxu0
      %2638 = vmatprep.mubr.bf16.mxu0 0
      %2639 = vmatmul.mubr.bf16.gmra.mrb[0].mxu0 %v2545
      %v2640 = vpop.f32.mrb[0].mxu0
      %v2641 = vadd.f32 0.0, %v2640
      %v2642 = vpop.f32.mrb[0].mxu0
      %v2643 = vpop.f32.mrb[0].mxu0
      %v2644 = vadd.f32 0.0, %v2643
      %v2645 = vpop.f32.mrb[0].mxu0
      %2646 = vdwg.mxu0
      %v2647 = vadd.f32 %v2393, %v2585
      %v2648 = vadd.f32 %v2394, %v2588
      %v2649 = vadd.f32 %v2395, %v2593
      %v2650 = vadd.f32 %v2396, %v2596
      %v2651 = vadd.f32 %v2397, %v2601
      %v2652 = vadd.f32 %v2398, %v2604
      %v2653 = vadd.f32 %v2399, %v2609
      %v2654 = vadd.f32 %v2400, %v2612
      %v2655 = vadd.f32 %v2401, %v2617
      %v2656 = vadd.f32 %v2402, %v2620
      %v2657 = vadd.f32 %v2403, %v2625
      %v2658 = vadd.f32 %v2404, %v2628
      %v2659 = vadd.f32 %v2405, %v2633
      %v2660 = vadd.f32 %v2406, %v2636
      %v2661 = vadd.f32 %v2407, %v2641
      %v2662 = vadd.f32 %v2408, %v2644
      %v2663 = vld [vmem:[%s2] sm:$0x1]
      %v2665 = vlaneseq
      %v2666 = vshrl.u32 %v2665, 7
      %v2667 = vsub.s32 0, %v2666
      %v2668 = vrot.slane %v2663, %v2667
      %v2670 = vadd.f32 %v2647, %v2668
      %v2671 = vadd.f32 %v2648, %v2668
      %v2672 = vadd.f32 %v2649, %v2668
      %v2673 = vadd.f32 %v2650, %v2668
      %v2674 = vadd.f32 %v2651, %v2668
      %v2675 = vadd.f32 %v2652, %v2668
      %v2676 = vadd.f32 %v2653, %v2668
      %v2677 = vadd.f32 %v2654, %v2668
      %v2678 = vadd.f32 %v2655, %v2668
      %v2679 = vadd.f32 %v2656, %v2668
      %v2680 = vadd.f32 %v2657, %v2668
      %v2681 = vadd.f32 %v2658, %v2668
      %v2682 = vadd.f32 %v2659, %v2668
      %v2683 = vadd.f32 %v2660, %v2668
      %v2684 = vadd.f32 %v2661, %v2668
      %v2685 = vadd.f32 %v2662, %v2668
      %vm2686 = vcmp.gt.f32.partialorder %v2670, 0.0
      %vm2687 = vcmp.gt.f32.partialorder %v2671, 0.0
      %vm2688 = vcmp.gt.f32.partialorder %v2672, 0.0
      %vm2689 = vcmp.gt.f32.partialorder %v2673, 0.0
      %vm2690 = vcmp.gt.f32.partialorder %v2674, 0.0
      %vm2691 = vcmp.gt.f32.partialorder %v2675, 0.0
      %vm2692 = vcmp.gt.f32.partialorder %v2676, 0.0
      %vm2693 = vcmp.gt.f32.partialorder %v2677, 0.0
      %vm2694 = vcmp.gt.f32.partialorder %v2678, 0.0
      %vm2695 = vcmp.gt.f32.partialorder %v2679, 0.0
      %vm2696 = vcmp.gt.f32.partialorder %v2680, 0.0
      %vm2697 = vcmp.gt.f32.partialorder %v2681, 0.0
      %vm2698 = vcmp.gt.f32.partialorder %v2682, 0.0
      %vm2699 = vcmp.gt.f32.partialorder %v2683, 0.0
      %vm2700 = vcmp.gt.f32.partialorder %v2684, 0.0
      %vm2701 = vcmp.gt.f32.partialorder %v2685, 0.0
      %v2702 = vmul.f32 %v2670, 0.01
      %v2703 = vmul.f32 %v2671, 0.01
      %v2704 = vmul.f32 %v2672, 0.01
      %v2705 = vmul.f32 %v2673, 0.01
      %v2706 = vmul.f32 %v2674, 0.01
      %v2707 = vmul.f32 %v2675, 0.01
      %v2708 = vmul.f32 %v2676, 0.01
      %v2709 = vmul.f32 %v2677, 0.01
      %v2710 = vmul.f32 %v2678, 0.01
      %v2711 = vmul.f32 %v2679, 0.01
      %v2712 = vmul.f32 %v2680, 0.01
      %v2713 = vmul.f32 %v2681, 0.01
      %v2714 = vmul.f32 %v2682, 0.01
      %v2715 = vmul.f32 %v2683, 0.01
      %v2716 = vmul.f32 %v2684, 0.01
      %v2717 = vmul.f32 %v2685, 0.01
      %v2718 = vsel %vm2686, %v2670, %v2702
      %v2719 = vsel %vm2687, %v2671, %v2703
      %v2720 = vsel %vm2688, %v2672, %v2704
      %v2721 = vsel %vm2689, %v2673, %v2705
      %v2722 = vsel %vm2690, %v2674, %v2706
      %v2723 = vsel %vm2691, %v2675, %v2707
      %v2724 = vsel %vm2692, %v2676, %v2708
      %v2725 = vsel %vm2693, %v2677, %v2709
      %v2726 = vsel %vm2694, %v2678, %v2710
      %v2727 = vsel %vm2695, %v2679, %v2711
      %v2728 = vsel %vm2696, %v2680, %v2712
      %v2729 = vsel %vm2697, %v2681, %v2713
      %v2730 = vsel %vm2698, %v2682, %v2714
      %v2731 = vsel %vm2699, %v2683, %v2715
      %v2732 = vsel %vm2700, %v2684, %v2716
      %v2733 = vsel %vm2701, %v2685, %v2717
      %v2734 = vcombine.low %v2718, %v2722
      %v2735 = vcombine.high %v2718, %v2722
      %v2737 = vunpack.c.l.s4 1983009808
      %v2738 = vunpack.c.0.s8 %v2737
      %v2739 = vlaneseq
      %v2740 = vshrl.u32 %v2739, 7
      %v2741 = vsub.s32 %v2738, %v2740
      %v2742 = vrot.slane %v2734, %v2741
      %v2744 = vunpack.c.l.s4 1983009808
      %v2745 = vunpack.c.0.s8 %v2744
      %v2746 = vlaneseq
      %v2747 = vshrl.u32 %v2746, 7
      %v2748 = vsub.s32 %v2745, %v2747
      %v2749 = vrot.slane %v2735, %v2748
      %v2750 = vcombine.low %v2720, %v2724
      %v2751 = vcombine.high %v2720, %v2724
      %v2753 = vunpack.c.l.s4 1983009808
      %v2754 = vunpack.c.0.s8 %v2753
      %v2755 = vlaneseq
      %v2756 = vshrl.u32 %v2755, 7
      %v2757 = vsub.s32 %v2754, %v2756
      %v2758 = vrot.slane %v2750, %v2757
      %v2760 = vunpack.c.l.s4 1983009808
      %v2761 = vunpack.c.0.s8 %v2760
      %v2762 = vlaneseq
      %v2763 = vshrl.u32 %v2762, 7
      %v2764 = vsub.s32 %v2761, %v2763
      %v2765 = vrot.slane %v2751, %v2764
      %v2766 = vcombine.low %v2726, %v2730
      %v2767 = vcombine.high %v2726, %v2730
      %v2769 = vunpack.c.l.s4 1983009808
      %v2770 = vunpack.c.0.s8 %v2769
      %v2771 = vlaneseq
      %v2772 = vshrl.u32 %v2771, 7
      %v2773 = vsub.s32 %v2770, %v2772
      %v2774 = vrot.slane %v2766, %v2773
      %v2776 = vunpack.c.l.s4 1983009808
      %v2777 = vunpack.c.0.s8 %v2776
      %v2778 = vlaneseq
      %v2779 = vshrl.u32 %v2778, 7
      %v2780 = vsub.s32 %v2777, %v2779
      %v2781 = vrot.slane %v2767, %v2780
      %v2782 = vcombine.low %v2728, %v2732
      %v2783 = vcombine.high %v2728, %v2732
      %v2785 = vunpack.c.l.s4 1983009808
      %v2786 = vunpack.c.0.s8 %v2785
      %v2787 = vlaneseq
      %v2788 = vshrl.u32 %v2787, 7
      %v2789 = vsub.s32 %v2786, %v2788
      %v2790 = vrot.slane %v2782, %v2789
      %v2792 = vunpack.c.l.s4 1983009808
      %v2793 = vunpack.c.0.s8 %v2792
      %v2794 = vlaneseq
      %v2795 = vshrl.u32 %v2794, 7
      %v2796 = vsub.s32 %v2793, %v2795
      %v2797 = vrot.slane %v2783, %v2796
      %v2798 = vcombine.low %v2742, %v2758
      %v2799 = vcombine.high %v2742, %v2758
      %v2801 = vunpack.c.l.s4 1934713408
      %v2802 = vunpack.c.0.s8 %v2801
      %v2803 = vlaneseq
      %v2804 = vshrl.u32 %v2803, 7
      %v2805 = vsub.s32 %v2802, %v2804
      %v2806 = vrot.slane %v2798, %v2805
      %v2808 = vunpack.c.l.s4 1934713408
      %v2809 = vunpack.c.0.s8 %v2808
      %v2810 = vlaneseq
      %v2811 = vshrl.u32 %v2810, 7
      %v2812 = vsub.s32 %v2809, %v2811
      %v2813 = vrot.slane %v2799, %v2812
      %v2814 = vcombine.low %v2749, %v2765
      %v2815 = vcombine.high %v2749, %v2765
      %v2817 = vunpack.c.l.s4 1934713408
      %v2818 = vunpack.c.0.s8 %v2817
      %v2819 = vlaneseq
      %v2820 = vshrl.u32 %v2819, 7
      %v2821 = vsub.s32 %v2818, %v2820
      %v2822 = vrot.slane %v2814, %v2821
      %v2824 = vunpack.c.l.s4 1934713408
      %v2825 = vunpack.c.0.s8 %v2824
      %v2826 = vlaneseq
      %v2827 = vshrl.u32 %v2826, 7
      %v2828 = vsub.s32 %v2825, %v2827
      %v2829 = vrot.slane %v2815, %v2828
      %v2830 = vcombine.low %v2774, %v2790
      %v2831 = vcombine.high %v2774, %v2790
      %v2833 = vunpack.c.l.s4 1934713408
      %v2834 = vunpack.c.0.s8 %v2833
      %v2835 = vlaneseq
      %v2836 = vshrl.u32 %v2835, 7
      %v2837 = vsub.s32 %v2834, %v2836
      %v2838 = vrot.slane %v2830, %v2837
      %v2840 = vunpack.c.l.s4 1934713408
      %v2841 = vunpack.c.0.s8 %v2840
      %v2842 = vlaneseq
      %v2843 = vshrl.u32 %v2842, 7
      %v2844 = vsub.s32 %v2841, %v2843
      %v2845 = vrot.slane %v2831, %v2844
      %v2846 = vcombine.low %v2781, %v2797
      %v2847 = vcombine.high %v2781, %v2797
      %v2849 = vunpack.c.l.s4 1934713408
      %v2850 = vunpack.c.0.s8 %v2849
      %v2851 = vlaneseq
      %v2852 = vshrl.u32 %v2851, 7
      %v2853 = vsub.s32 %v2850, %v2852
      %v2854 = vrot.slane %v2846, %v2853
      %v2856 = vunpack.c.l.s4 1934713408
      %v2857 = vunpack.c.0.s8 %v2856
      %v2858 = vlaneseq
      %v2859 = vshrl.u32 %v2858, 7
      %v2860 = vsub.s32 %v2857, %v2859
      %v2861 = vrot.slane %v2847, %v2860
      %v2862 = vcombine.low %v2806, %v2838
      %v2863 = vcombine.high %v2806, %v2838
      %v2864 = vcombine.low %v2813, %v2845
      %v2865 = vcombine.high %v2813, %v2845
      %v2866 = vcombine.low %v2822, %v2854
      %v2867 = vcombine.high %v2822, %v2854
      %v2868 = vcombine.low %v2829, %v2861
      %v2869 = vcombine.high %v2829, %v2861
      %v2870 = vcombine.low %v2719, %v2723
      %v2871 = vcombine.high %v2719, %v2723
      %v2873 = vunpack.c.l.s4 1983009808
      %v2874 = vunpack.c.0.s8 %v2873
      %v2875 = vlaneseq
      %v2876 = vshrl.u32 %v2875, 7
      %v2877 = vsub.s32 %v2874, %v2876
      %v2878 = vrot.slane %v2870, %v2877
      %v2880 = vunpack.c.l.s4 1983009808
      %v2881 = vunpack.c.0.s8 %v2880
      %v2882 = vlaneseq
      %v2883 = vshrl.u32 %v2882, 7
      %v2884 = vsub.s32 %v2881, %v2883
      %v2885 = vrot.slane %v2871, %v2884
      %v2886 = vcombine.low %v2721, %v2725
      %v2887 = vcombine.high %v2721, %v2725
      %v2889 = vunpack.c.l.s4 1983009808
      %v2890 = vunpack.c.0.s8 %v2889
      %v2891 = vlaneseq
      %v2892 = vshrl.u32 %v2891, 7
      %v2893 = vsub.s32 %v2890, %v2892
      %v2894 = vrot.slane %v2886, %v2893
      %v2896 = vunpack.c.l.s4 1983009808
      %v2897 = vunpack.c.0.s8 %v2896
      %v2898 = vlaneseq
      %v2899 = vshrl.u32 %v2898, 7
      %v2900 = vsub.s32 %v2897, %v2899
      %v2901 = vrot.slane %v2887, %v2900
      %v2902 = vcombine.low %v2727, %v2731
      %v2903 = vcombine.high %v2727, %v2731
      %v2905 = vunpack.c.l.s4 1983009808
      %v2906 = vunpack.c.0.s8 %v2905
      %v2907 = vlaneseq
      %v2908 = vshrl.u32 %v2907, 7
      %v2909 = vsub.s32 %v2906, %v2908
      %v2910 = vrot.slane %v2902, %v2909
      %v2912 = vunpack.c.l.s4 1983009808
      %v2913 = vunpack.c.0.s8 %v2912
      %v2914 = vlaneseq
      %v2915 = vshrl.u32 %v2914, 7
      %v2916 = vsub.s32 %v2913, %v2915
      %v2917 = vrot.slane %v2903, %v2916
      %v2918 = vcombine.low %v2729, %v2733
      %v2919 = vcombine.high %v2729, %v2733
      %v2921 = vunpack.c.l.s4 1983009808
      %v2922 = vunpack.c.0.s8 %v2921
      %v2923 = vlaneseq
      %v2924 = vshrl.u32 %v2923, 7
      %v2925 = vsub.s32 %v2922, %v2924
      %v2926 = vrot.slane %v2918, %v2925
      %v2928 = vunpack.c.l.s4 1983009808
      %v2929 = vunpack.c.0.s8 %v2928
      %v2930 = vlaneseq
      %v2931 = vshrl.u32 %v2930, 7
      %v2932 = vsub.s32 %v2929, %v2931
      %v2933 = vrot.slane %v2919, %v2932
      %v2934 = vcombine.low %v2878, %v2894
      %v2935 = vcombine.high %v2878, %v2894
      %v2937 = vunpack.c.l.s4 1934713408
      %v2938 = vunpack.c.0.s8 %v2937
      %v2939 = vlaneseq
      %v2940 = vshrl.u32 %v2939, 7
      %v2941 = vsub.s32 %v2938, %v2940
      %v2942 = vrot.slane %v2934, %v2941
      %v2944 = vunpack.c.l.s4 1934713408
      %v2945 = vunpack.c.0.s8 %v2944
      %v2946 = vlaneseq
      %v2947 = vshrl.u32 %v2946, 7
      %v2948 = vsub.s32 %v2945, %v2947
      %v2949 = vrot.slane %v2935, %v2948
      %v2950 = vcombine.low %v2885, %v2901
      %v2951 = vcombine.high %v2885, %v2901
      %v2953 = vunpack.c.l.s4 1934713408
      %v2954 = vunpack.c.0.s8 %v2953
      %v2955 = vlaneseq
      %v2956 = vshrl.u32 %v2955, 7
      %v2957 = vsub.s32 %v2954, %v2956
      %v2958 = vrot.slane %v2950, %v2957
      %v2960 = vunpack.c.l.s4 1934713408
      %v2961 = vunpack.c.0.s8 %v2960
      %v2962 = vlaneseq
      %v2963 = vshrl.u32 %v2962, 7
      %v2964 = vsub.s32 %v2961, %v2963
      %v2965 = vrot.slane %v2951, %v2964
      %v2966 = vcombine.low %v2910, %v2926
      %v2967 = vcombine.high %v2910, %v2926
      %v2969 = vunpack.c.l.s4 1934713408
      %v2970 = vunpack.c.0.s8 %v2969
      %v2971 = vlaneseq
      %v2972 = vshrl.u32 %v2971, 7
      %v2973 = vsub.s32 %v2970, %v2972
      %v2974 = vrot.slane %v2966, %v2973
      %v2976 = vunpack.c.l.s4 1934713408
      %v2977 = vunpack.c.0.s8 %v2976
      %v2978 = vlaneseq
      %v2979 = vshrl.u32 %v2978, 7
      %v2980 = vsub.s32 %v2977, %v2979
      %v2981 = vrot.slane %v2967, %v2980
      %v2982 = vcombine.low %v2917, %v2933
      %v2983 = vcombine.high %v2917, %v2933
      %v2985 = vunpack.c.l.s4 1934713408
      %v2986 = vunpack.c.0.s8 %v2985
      %v2987 = vlaneseq
      %v2988 = vshrl.u32 %v2987, 7
      %v2989 = vsub.s32 %v2986, %v2988
      %v2990 = vrot.slane %v2982, %v2989
      %v2992 = vunpack.c.l.s4 1934713408
      %v2993 = vunpack.c.0.s8 %v2992
      %v2994 = vlaneseq
      %v2995 = vshrl.u32 %v2994, 7
      %v2996 = vsub.s32 %v2993, %v2995
      %v2997 = vrot.slane %v2983, %v2996
      %v2998 = vcombine.low %v2942, %v2974
      %v2999 = vcombine.high %v2942, %v2974
      %v3000 = vcombine.low %v2949, %v2981
      %v3001 = vcombine.high %v2949, %v2981
      %v3002 = vcombine.low %v2958, %v2990
      %v3003 = vcombine.high %v2958, %v2990
      %v3004 = vcombine.low %v2965, %v2997
      %v3005 = vcombine.high %v2965, %v2997
      %3007 = vrot.lane.b32.xlu0 %v2863, 16
      %v3008 = vpop.permute.xlu0 %3007
      %3011 = vrot.lane.b32.xlu0 %v2864, 32
      %v3012 = vpop.permute.xlu0 %3011
      %3015 = vrot.lane.b32.xlu0 %v2865, 48
      %v3016 = vpop.permute.xlu0 %3015
      %3019 = vrot.lane.b32.xlu0 %v2866, 64
      %v3020 = vpop.permute.xlu0 %3019
      %3023 = vrot.lane.b32.xlu0 %v2867, 80
      %v3024 = vpop.permute.xlu0 %3023
      %3027 = vrot.lane.b32.xlu0 %v2868, 96
      %v3028 = vpop.permute.xlu0 %3027
      %3031 = vrot.lane.b32.xlu0 %v2869, 112
      %v3032 = vpop.permute.xlu0 %3031
      %3035 = vrot.lane.b32.xlu0 %v2999, 16
      %v3036 = vpop.permute.xlu0 %3035
      %3039 = vrot.lane.b32.xlu0 %v3000, 32
      %v3040 = vpop.permute.xlu0 %3039
      %3043 = vrot.lane.b32.xlu0 %v3001, 48
      %v3044 = vpop.permute.xlu0 %3043
      %3047 = vrot.lane.b32.xlu0 %v3002, 64
      %v3048 = vpop.permute.xlu0 %3047
      %3051 = vrot.lane.b32.xlu0 %v3003, 80
      %v3052 = vpop.permute.xlu0 %3051
      %3055 = vrot.lane.b32.xlu0 %v3004, 96
      %v3056 = vpop.permute.xlu0 %3055
      %3059 = vrot.lane.b32.xlu0 %v3005, 112
      %v3060 = vpop.permute.xlu0 %3059
      %vm3062 = vcmask 130048
      %v3063 = vsel %vm3062, %v2862, %v3008
      %vm3064 = vcmask 261120
      %v3065 = vsel %vm3064, %v3063, %v3012
      %vm3066 = vcmask 392192
      %v3067 = vsel %vm3066, %v3065, %v3016
      %vm3068 = vcmask 523264
      %v3069 = vsel %vm3068, %v3067, %v3020
      %vm3070 = vcmask 654336
      %v3071 = vsel %vm3070, %v3069, %v3024
      %vm3072 = vcmask 785408
      %v3073 = vsel %vm3072, %v3071, %v3028
      %vm3074 = vcmask 916480
      %v3075 = vsel %vm3074, %v3073, %v3032
      %v3076 = vsel %vm3062, %v2998, %v3036
      %v3077 = vsel %vm3064, %v3076, %v3040
      %v3078 = vsel %vm3066, %v3077, %v3044
      %v3079 = vsel %vm3068, %v3078, %v3048
      %v3080 = vsel %vm3070, %v3079, %v3052
      %v3081 = vsel %vm3072, %v3080, %v3056
      %v3082 = vsel %vm3074, %v3081, %v3060
      %3083 = vst [vmem:[%s206] sm:$0xff] %v3075
      %3084 = vst [vmem:[%s206 + $0x8] sm:$0xff] %v3082
      %p3085 = scmp.lt.s32.totalorder %s18, 1
      %s3086 = scalar_select %p3085, %s18, 1
      %p3087 = scmp.lt.s32.totalorder %s19, 1
      %s3088 = scalar_select %p3087, %s19, 1
      %s3089 = smul.addr %s3088, 2
      %s3090 = smul.addr %s3086, 4
      %s3091 = sadd.s32 %s3089, %s3090
      %s3092 = smul.addr %s3091, 8
      %s3093 = scalar_lea.vmem %s3, %s3092
      // Predicated region
      $region33: #{complex_conv_layer.1} parent=31 // pred_check
        %p3094 = pneg %p116
      $region34: #{complex_conv_layer.1} parent=31 // pred_check_branch
        %3096 = sbr.rel (%p3094) target = $region36
      $region35: #{complex_conv_layer.1} parent=31 // pred_region
        _
      $region36: #{complex_conv_layer.1} parent=31 // pred_fallthru
        _
    $region32: #{complex_conv_layer.1} parent=5 // pred_fallthru
      _
    %p3097 = scmp.le.s32.totalorder 2, %s9
    // Predicated region
    $region37: #{complex_conv_layer.1} parent=5 // pred_check
      %p3098 = pneg %p3097
    $region38: #{complex_conv_layer.1} parent=5 // pred_check_branch
      %3100 = sbr.rel (%p3098) target = $region40
    $region39: #{complex_conv_layer.1} parent=5 // pred_region
      %s3101 = ssub.s32 %s9, 2
      // Predicated region
      $region41: #{complex_conv_layer.1} parent=39 // pred_check
        %p3102 = pneg %p122
      $region42: #{complex_conv_layer.1} parent=39 // pred_check_branch
        %3104 = sbr.rel (%p3102) target = $region44
      $region43: #{complex_conv_layer.1} parent=39 // pred_region
        %p3105 = scmp.lt.s32.totalorder %s20, 1
        %s3106 = scalar_select %p3105, %s20, 1
        %p3107 = scmp.lt.s32.totalorder %s21, 1
        %s3108 = scalar_select %p3107, %s21, 1
        %s3109 = smul.addr %s3108, 2
        %s3110 = smul.addr %s3106, 4
        %s3111 = sadd.s32 %s3109, %s3110
        %s3112 = smul.addr %s3111, 8
        %s3113 = scalar_lea.vmem %s3, %s3112
      $region44: #{complex_conv_layer.1} parent=39 // pred_fallthru
        _
    $region40: #{complex_conv_layer.1} parent=5 // pred_fallthru
      _
  $region6: #{complex_conv_layer.1} parent=0 // loop_footer
    %s13 = sadd.s32 1, %s9
  $region7: #{complex_conv_layer.1} parent=0 // loop_footer_branch
    %8 = sbr.rel target = $region3
  $region8: #{complex_conv_layer.1} parent=0 // loop_exit
    _

</llo_original>
